<compile_context>
chip_gen: v7x
topology: tpu7x:2x2x1
jax: 0.10.0
libtpu: 0.0.40
codegen_flags: <defaults>
</compile_context>

<pallas_src>
import functools

import jax
import jax.numpy as jnp
import numpy as np
from jax.experimental import pallas as pl
from jax.experimental.pallas import tpu as pltpu

EPS = 1e-5


# --------------------------------- kernel ----------------------------------- #
def _residual_block_kernel(x_ref, row_ref, col_ref,
                           w1_ref, b1_ref, g1_ref, be1_ref,
                           w2_ref, g2_ref, be2_ref,
                           o_ref, taps_ref, *, h, w, c_pad):
    x = x_ref[...]                       # (c_pad, N*H*W) f32
    row = row_ref[...]                   # (1, N*H*W) i32  per-image row index
    col = col_ref[...]                   # (1, N*H*W) i32  per-image col index
    nhw = x.shape[1]
    inv_cnt = 1.0 / float(nhw)           # BN count = N*H*W = lane width

    def conv3x3(inp, w_cat, bias_rows):
        # 9 spatial taps: lane roll (XLU) + boundary zeroing (VALU).  Taps are
        # staged into the f32 VMEM scratch so only one is live in vregs at a
        # time; masks are rematerialized per tap from the row/col planes.
        for k in range(9):
            dy, dx = k // 3 - 1, k % 3 - 1
            s = dy * w + dx                          # shifted[p] = inp[p + s]
            t = pltpu.roll(inp, (-s) % nhw, axis=1) if s != 0 else inp
            m = None
            if dy == 1:
                m = row < (h - 1)
            elif dy == -1:
                m = row > 0
            if dx == 1:
                mx = col < (w - 1)
                m = mx if m is None else jnp.logical_and(m, mx)
            elif dx == -1:
                mx = col > 0
                m = mx if m is None else jnp.logical_and(m, mx)
            if m is not None:
                # (1, nhw) 0/1 lane mask, broadcast over the channel rows.
                t = t * jnp.where(m, 1.0, 0.0)
            taps_ref[pl.ds(k * c_pad, c_pad), :] = t
        # Channel contraction: one MXU matmul, bf16 operands, f32 accumulate.
        taps = taps_ref[...].astype(jnp.bfloat16)            # (9*c_pad, nhw)
        out = jnp.dot(w_cat, taps, preferred_element_type=jnp.float32)
        if bias_rows is not None:
            out = out + bias_rows
        return out

    def batchnorm(y, gamma_rows, beta_rows):
        # Training-mode BN, single-pass stats: one stacked lane reduction gives
        # sum(y) and sum(y*y); biased var = E[y^2] - E[y]^2 (f32 accumulation).
        stat = jnp.sum(jnp.concatenate([y, y * y], axis=0),
                       axis=1, keepdims=True)                # (2*c_pad, 1)
        mean = stat[:c_pad] * inv_cnt
        var = stat[c_pad:] * inv_cnt - mean * mean
        scale = gamma_rows * jax.lax.rsqrt(var + EPS)
        shift = beta_rows - mean * scale
        return y * scale + shift                             # one FMA / element

    # ---- stage 1: y = bn1(relu(conv1(x))) -- intermediate stays on-chip ----
    y = conv3x3(x, w1_ref[...], b1_ref[...])
    y = jnp.maximum(y, 0.0)
    y = batchnorm(y, g1_ref[...], be1_ref[...])

    # ---- stage 2: out = relu(bn2(conv2(y)) + x) ----
    # conv2 bias omitted: cancelled exactly by bn2's mean subtraction.
    z = conv3x3(y, w2_ref[...], None)
    z = batchnorm(z, g2_ref[...], be2_ref[...])
    o_ref[...] = jnp.maximum(z + x, 0.0)


# ------------------------------- wrapper ------------------------------------ #
def _expand_conv_weight(w_oihw, c_pad):
    """PyTorch conv weight (Cout, Cin, 3, 3) -> (C_pad, 9*C_pad) bf16 operand
    for the concatenated-taps matmul (column index = k*C_pad + ci)."""
    c = w_oihw.shape[0]
    wk = jnp.asarray(w_oihw, jnp.float32).reshape(c, c, 9)    # (co, ci, k)
    wk = jnp.transpose(wk, (0, 2, 1))                         # (co, k, ci)
    wk = jnp.pad(wk, ((0, c_pad - c), (0, 0), (0, c_pad - c)))
    return wk.reshape(c_pad, 9 * c_pad).astype(jnp.bfloat16)


def _per_row(v, c_pad):
    """(C,) per-channel vector -> (C_pad, 1) per-row column (zero-padded)."""
    v = jnp.asarray(v, jnp.float32)
    return jnp.pad(v, (0, c_pad - v.shape[0])).reshape(c_pad, 1)


@jax.jit
def residual_block(x_nchw, params):
    """Forward pass of ResidualBlock.  x_nchw: (N, C, H, W) float32."""
    w1, b1, g1, be1, w2, b2, g2, be2 = params   # b2 unused: cancelled by bn2
    del b2
    n, c, h, w = x_nchw.shape
    c_pad = max(8, -(-c // 8) * 8)              # sublane-align the channel rows
    nhw = n * h * w

    # (N,C,H,W) -> (C_pad, N*H*W): channels on sublanes, batch*spatial on lanes
    x2d = jnp.transpose(x_nchw.astype(jnp.float32), (1, 0, 2, 3)).reshape(c, nhw)
    x2d = jnp.pad(x2d, ((0, c_pad - c), (0, 0)))

    # Per-image row/col index planes (avoids in-kernel div/mod for general W).
    lane = jnp.arange(nhw, dtype=jnp.int32)
    row_plane = ((lane % (h * w)) // w).reshape(1, nhw)
    col_plane = (lane % w).reshape(1, nhw)

    kernel = functools.partial(_residual_block_kernel, h=h, w=w, c_pad=c_pad)
    vmem = lambda: pl.BlockSpec(memory_space=pltpu.MemorySpace.VMEM)

    out2d = pl.pallas_call(
        kernel,
        out_shape=jax.ShapeDtypeStruct((c_pad, nhw), jnp.float32),
        in_specs=[vmem() for _ in range(10)],
        out_specs=vmem(),
        scratch_shapes=[pltpu.VMEM((9 * c_pad, nhw), jnp.float32)],  # tap stage
    )(x2d, row_plane, col_plane,
      _expand_conv_weight(w1, c_pad), _per_row(b1, c_pad),
      _per_row(g1, c_pad), _per_row(be1, c_pad),
      _expand_conv_weight(w2, c_pad),
      _per_row(g2, c_pad), _per_row(be2, c_pad))

    out = out2d[:c].reshape(c, n, h, w)
    return jnp.transpose(out, (1, 0, 2, 3))


# ------------------------- reference (pure JAX) ----------------------------- #
def reference(x_nchw, params):
    w1, b1, g1, be1, w2, b2, g2, be2 = params
    x = jnp.transpose(x_nchw, (0, 2, 3, 1)).astype(jnp.float32)   # NHWC

    def conv(a, w_oihw, b):
        w_hwio = jnp.transpose(w_oihw, (2, 3, 1, 0))
        y = jax.lax.conv_general_dilated(
            a, w_hwio, (1, 1), "SAME",
            dimension_numbers=("NHWC", "HWIO", "NHWC"),
            precision=jax.lax.Precision.HIGHEST)
        return y + b

    def bn(a, g, be):
        m = jnp.mean(a, axis=(0, 1, 2), keepdims=True)
        v = jnp.mean((a - m) ** 2, axis=(0, 1, 2), keepdims=True)
        return (a - m) * jax.lax.rsqrt(v + EPS) * g + be

    y = bn(jnp.maximum(conv(x, w1, b1), 0.0), g1, be1)
    y = bn(conv(y, w2, b2), g2, be2)          # reference keeps b2 (it cancels)
    y = jnp.maximum(y + x, 0.0)
    return jnp.transpose(y, (0, 3, 1, 2))


# --------------------------------- main ------------------------------------- #
def init_params(key, c):
    ks = jax.random.split(key, 8)
    w1 = 0.1 * jax.random.normal(ks[0], (c, c, 3, 3), jnp.float32)   # OIHW
    b1 = 0.1 * jax.random.normal(ks[1], (c,), jnp.float32)
    g1 = 1.0 + 0.1 * jax.random.normal(ks[2], (c,), jnp.float32)
    be1 = 0.1 * jax.random.normal(ks[3], (c,), jnp.float32)
    w2 = 0.1 * jax.random.normal(ks[4], (c, c, 3, 3), jnp.float32)   # OIHW
    b2 = 0.1 * jax.random.normal(ks[5], (c,), jnp.float32)
    g2 = 1.0 + 0.1 * jax.random.normal(ks[6], (c,), jnp.float32)
    be2 = 0.1 * jax.random.normal(ks[7], (c,), jnp.float32)
    return (w1, b1, g1, be1, w2, b2, g2, be2)


if __name__ == "__main__":
    key = jax.random.PRNGKey(0)
    k_x, k_p = jax.random.split(key)
    N, C, H, W = 2, 4, 16, 16
    x = jax.random.normal(k_x, (N, C, H, W), jnp.float32)
    params = init_params(k_p, C)

    out = jax.block_until_ready(residual_block(x, params))

    ref = reference(x, params)
    # Kernel uses bf16 MXU operands (f32 accumulation) and single-pass BN
    # statistics vs. the Precision.HIGHEST f32 reference -> tolerance is set
    # slightly looser than a pure-f32 comparison would need.
    np.testing.assert_allclose(np.asarray(out), np.asarray(ref),
                               atol=2e-2, rtol=1e-2)
    print("KERNEL_OK")
</pallas_src>

<mosaic_0001>
module attributes {stable_mosaic.version = 11 : i64} {
  func.func @_residual_block_kernel(%arg0: memref<8x512xf32, #tpu.memory_space<vmem>>, %arg1: memref<1x512xi32, #tpu.memory_space<vmem>>, %arg2: memref<1x512xi32, #tpu.memory_space<vmem>>, %arg3: memref<8x72xbf16, #tpu.memory_space<vmem>>, %arg4: memref<8x1xf32, #tpu.memory_space<vmem>>, %arg5: memref<8x1xf32, #tpu.memory_space<vmem>>, %arg6: memref<8x1xf32, #tpu.memory_space<vmem>>, %arg7: memref<8x72xbf16, #tpu.memory_space<vmem>>, %arg8: memref<8x1xf32, #tpu.memory_space<vmem>>, %arg9: memref<8x1xf32, #tpu.memory_space<vmem>>, %arg10: memref<8x512xf32, #tpu.memory_space<vmem>>, %arg11: memref<72x512xf32, #tpu.memory_space<vmem>>) attributes {dimension_semantics = [], scalar_prefetch = 0 : i64, scratch_operands = 1 : i64, tpu.core_type = #tpu.core_type<tc>} {
    %c0 = arith.constant 0 : index
    %c0_0 = arith.constant 0 : index
    %0 = vector.load %arg0[%c0, %c0_0] : memref<8x512xf32, #tpu.memory_space<vmem>>, vector<8x512xf32>
    %c0_1 = arith.constant 0 : index
    %c0_2 = arith.constant 0 : index
    %1 = vector.load %arg1[%c0_1, %c0_2] : memref<1x512xi32, #tpu.memory_space<vmem>>, vector<1x512xi32>
    %c0_3 = arith.constant 0 : index
    %c0_4 = arith.constant 0 : index
    %2 = vector.load %arg2[%c0_3, %c0_4] : memref<1x512xi32, #tpu.memory_space<vmem>>, vector<1x512xi32>
    %c0_5 = arith.constant 0 : index
    %c0_6 = arith.constant 0 : index
    %3 = vector.load %arg3[%c0_5, %c0_6] : memref<8x72xbf16, #tpu.memory_space<vmem>>, vector<8x72xbf16>
    %c0_7 = arith.constant 0 : index
    %c0_8 = arith.constant 0 : index
    %4 = vector.load %arg4[%c0_7, %c0_8] : memref<8x1xf32, #tpu.memory_space<vmem>>, vector<8x1xf32>
    %c17_i32 = arith.constant 17 : i32
    %5 = tpu.dynamic_rotate %0 by %c17_i32 dim 1 : vector<8x512xf32>, i32 -> vector<8x512xf32>
    %c0_i32 = arith.constant 0 : i32
    %6 = vector.broadcast %c0_i32 : i32 to vector<1x512xi32>
    %7 = arith.cmpi sgt, %1, %6 : vector<1x512xi32>
    %c0_i32_9 = arith.constant 0 : i32
    %8 = vector.broadcast %c0_i32_9 : i32 to vector<1x512xi32>
    %9 = arith.cmpi sgt, %2, %8 : vector<1x512xi32>
    %10 = arith.andi %7, %9 : vector<1x512xi1>
    %cst = arith.constant 1.000000e+00 : f32
    %cst_10 = arith.constant 0.000000e+00 : f32
    %11 = vector.broadcast %cst : f32 to vector<1x512xf32>
    %12 = vector.broadcast %cst_10 : f32 to vector<1x512xf32>
    %13 = arith.select %10, %11, %12 : vector<1x512xi1>, vector<1x512xf32>
    %14 = vector.broadcast %13 : vector<1x512xf32> to vector<8x512xf32>
    %15 = arith.mulf %5, %14 : vector<8x512xf32>
    %c0_11 = arith.constant 0 : index
    %c0_12 = arith.constant 0 : index
    %16 = vector.load %arg11[%c0_11, %c0_12] : memref<72x512xf32, #tpu.memory_space<vmem>>, vector<8x512xf32>
    tpu.vector_store %arg11[%c0_11, %c0_12], %15 {strides = array<i32>} : memref<72x512xf32, #tpu.memory_space<vmem>>, vector<8x512xf32>,
    %c16_i32 = arith.constant 16 : i32
    %17 = tpu.dynamic_rotate %0 by %c16_i32 dim 1 : vector<8x512xf32>, i32 -> vector<8x512xf32>
    %c0_i32_13 = arith.constant 0 : i32
    %18 = vector.broadcast %c0_i32_13 : i32 to vector<1x512xi32>
    %19 = arith.cmpi sgt, %1, %18 : vector<1x512xi32>
    %cst_14 = arith.constant 1.000000e+00 : f32
    %cst_15 = arith.constant 0.000000e+00 : f32
    %20 = vector.broadcast %cst_14 : f32 to vector<1x512xf32>
    %21 = vector.broadcast %cst_15 : f32 to vector<1x512xf32>
    %22 = arith.select %19, %20, %21 : vector<1x512xi1>, vector<1x512xf32>
    %23 = vector.broadcast %22 : vector<1x512xf32> to vector<8x512xf32>
    %24 = arith.mulf %17, %23 : vector<8x512xf32>
    %c8 = arith.constant 8 : index
    %c0_16 = arith.constant 0 : index
    %25 = vector.load %arg11[%c8, %c0_16] : memref<72x512xf32, #tpu.memory_space<vmem>>, vector<8x512xf32>
    tpu.vector_store %arg11[%c8, %c0_16], %24 {strides = array<i32>} : memref<72x512xf32, #tpu.memory_space<vmem>>, vector<8x512xf32>,
    %c15_i32 = arith.constant 15 : i32
    %26 = tpu.dynamic_rotate %0 by %c15_i32 dim 1 : vector<8x512xf32>, i32 -> vector<8x512xf32>
    %c0_i32_17 = arith.constant 0 : i32
    %27 = vector.broadcast %c0_i32_17 : i32 to vector<1x512xi32>
    %28 = arith.cmpi sgt, %1, %27 : vector<1x512xi32>
    %c15_i32_18 = arith.constant 15 : i32
    %29 = vector.broadcast %c15_i32_18 : i32 to vector<1x512xi32>
    %30 = arith.cmpi slt, %2, %29 : vector<1x512xi32>
    %31 = arith.andi %28, %30 : vector<1x512xi1>
    %cst_19 = arith.constant 1.000000e+00 : f32
    %cst_20 = arith.constant 0.000000e+00 : f32
    %32 = vector.broadcast %cst_19 : f32 to vector<1x512xf32>
    %33 = vector.broadcast %cst_20 : f32 to vector<1x512xf32>
    %34 = arith.select %31, %32, %33 : vector<1x512xi1>, vector<1x512xf32>
    %35 = vector.broadcast %34 : vector<1x512xf32> to vector<8x512xf32>
    %36 = arith.mulf %26, %35 : vector<8x512xf32>
    %c16 = arith.constant 16 : index
    %c0_21 = arith.constant 0 : index
    %37 = vector.load %arg11[%c16, %c0_21] : memref<72x512xf32, #tpu.memory_space<vmem>>, vector<8x512xf32>
    tpu.vector_store %arg11[%c16, %c0_21], %36 {strides = array<i32>} : memref<72x512xf32, #tpu.memory_space<vmem>>, vector<8x512xf32>,
    %c1_i32 = arith.constant 1 : i32
    %38 = tpu.dynamic_rotate %0 by %c1_i32 dim 1 : vector<8x512xf32>, i32 -> vector<8x512xf32>
    %c0_i32_22 = arith.constant 0 : i32
    %39 = vector.broadcast %c0_i32_22 : i32 to vector<1x512xi32>
    %40 = arith.cmpi sgt, %2, %39 : vector<1x512xi32>
    %cst_23 = arith.constant 1.000000e+00 : f32
    %cst_24 = arith.constant 0.000000e+00 : f32
    %41 = vector.broadcast %cst_23 : f32 to vector<1x512xf32>
    %42 = vector.broadcast %cst_24 : f32 to vector<1x512xf32>
    %43 = arith.select %40, %41, %42 : vector<1x512xi1>, vector<1x512xf32>
    %44 = vector.broadcast %43 : vector<1x512xf32> to vector<8x512xf32>
    %45 = arith.mulf %38, %44 : vector<8x512xf32>
    %c24 = arith.constant 24 : index
    %c0_25 = arith.constant 0 : index
    %46 = vector.load %arg11[%c24, %c0_25] : memref<72x512xf32, #tpu.memory_space<vmem>>, vector<8x512xf32>
    tpu.vector_store %arg11[%c24, %c0_25], %45 {strides = array<i32>} : memref<72x512xf32, #tpu.memory_space<vmem>>, vector<8x512xf32>,
    %c32 = arith.constant 32 : index
    %c0_26 = arith.constant 0 : index
    %47 = vector.load %arg11[%c32, %c0_26] : memref<72x512xf32, #tpu.memory_space<vmem>>, vector<8x512xf32>
    tpu.vector_store %arg11[%c32, %c0_26], %0 {strides = array<i32>} : memref<72x512xf32, #tpu.memory_space<vmem>>, vector<8x512xf32>,
    %c511_i32 = arith.constant 511 : i32
    %48 = tpu.dynamic_rotate %0 by %c511_i32 dim 1 : vector<8x512xf32>, i32 -> vector<8x512xf32>
    %c15_i32_27 = arith.constant 15 : i32
    %49 = vector.broadcast %c15_i32_27 : i32 to vector<1x512xi32>
    %50 = arith.cmpi slt, %2, %49 : vector<1x512xi32>
    %cst_28 = arith.constant 1.000000e+00 : f32
    %cst_29 = arith.constant 0.000000e+00 : f32
    %51 = vector.broadcast %cst_28 : f32 to vector<1x512xf32>
    %52 = vector.broadcast %cst_29 : f32 to vector<1x512xf32>
    %53 = arith.select %50, %51, %52 : vector<1x512xi1>, vector<1x512xf32>
    %54 = vector.broadcast %53 : vector<1x512xf32> to vector<8x512xf32>
    %55 = arith.mulf %48, %54 : vector<8x512xf32>
    %c40 = arith.constant 40 : index
    %c0_30 = arith.constant 0 : index
    %56 = vector.load %arg11[%c40, %c0_30] : memref<72x512xf32, #tpu.memory_space<vmem>>, vector<8x512xf32>
    tpu.vector_store %arg11[%c40, %c0_30], %55 {strides = array<i32>} : memref<72x512xf32, #tpu.memory_space<vmem>>, vector<8x512xf32>,
    %c497_i32 = arith.constant 497 : i32
    %57 = tpu.dynamic_rotate %0 by %c497_i32 dim 1 : vector<8x512xf32>, i32 -> vector<8x512xf32>
    %c15_i32_31 = arith.constant 15 : i32
    %58 = vector.broadcast %c15_i32_31 : i32 to vector<1x512xi32>
    %59 = arith.cmpi slt, %1, %58 : vector<1x512xi32>
    %c0_i32_32 = arith.constant 0 : i32
    %60 = vector.broadcast %c0_i32_32 : i32 to vector<1x512xi32>
    %61 = arith.cmpi sgt, %2, %60 : vector<1x512xi32>
    %62 = arith.andi %59, %61 : vector<1x512xi1>
    %cst_33 = arith.constant 1.000000e+00 : f32
    %cst_34 = arith.constant 0.000000e+00 : f32
    %63 = vector.broadcast %cst_33 : f32 to vector<1x512xf32>
    %64 = vector.broadcast %cst_34 : f32 to vector<1x512xf32>
    %65 = arith.select %62, %63, %64 : vector<1x512xi1>, vector<1x512xf32>
    %66 = vector.broadcast %65 : vector<1x512xf32> to vector<8x512xf32>
    %67 = arith.mulf %57, %66 : vector<8x512xf32>
    %c48 = arith.constant 48 : index
    %c0_35 = arith.constant 0 : index
    %68 = vector.load %arg11[%c48, %c0_35] : memref<72x512xf32, #tpu.memory_space<vmem>>, vector<8x512xf32>
    tpu.vector_store %arg11[%c48, %c0_35], %67 {strides = array<i32>} : memref<72x512xf32, #tpu.memory_space<vmem>>, vector<8x512xf32>,
    %c496_i32 = arith.constant 496 : i32
    %69 = tpu.dynamic_rotate %0 by %c496_i32 dim 1 : vector<8x512xf32>, i32 -> vector<8x512xf32>
    %c15_i32_36 = arith.constant 15 : i32
    %70 = vector.broadcast %c15_i32_36 : i32 to vector<1x512xi32>
    %71 = arith.cmpi slt, %1, %70 : vector<1x512xi32>
    %cst_37 = arith.constant 1.000000e+00 : f32
    %cst_38 = arith.constant 0.000000e+00 : f32
    %72 = vector.broadcast %cst_37 : f32 to vector<1x512xf32>
    %73 = vector.broadcast %cst_38 : f32 to vector<1x512xf32>
    %74 = arith.select %71, %72, %73 : vector<1x512xi1>, vector<1x512xf32>
    %75 = vector.broadcast %74 : vector<1x512xf32> to vector<8x512xf32>
    %76 = arith.mulf %69, %75 : vector<8x512xf32>
    %c56 = arith.constant 56 : index
    %c0_39 = arith.constant 0 : index
    %77 = vector.load %arg11[%c56, %c0_39] : memref<72x512xf32, #tpu.memory_space<vmem>>, vector<8x512xf32>
    tpu.vector_store %arg11[%c56, %c0_39], %76 {strides = array<i32>} : memref<72x512xf32, #tpu.memory_space<vmem>>, vector<8x512xf32>,
    %c495_i32 = arith.constant 495 : i32
    %78 = tpu.dynamic_rotate %0 by %c495_i32 dim 1 : vector<8x512xf32>, i32 -> vector<8x512xf32>
    %c15_i32_40 = arith.constant 15 : i32
    %79 = vector.broadcast %c15_i32_40 : i32 to vector<1x512xi32>
    %80 = arith.cmpi slt, %1, %79 : vector<1x512xi32>
    %c15_i32_41 = arith.constant 15 : i32
    %81 = vector.broadcast %c15_i32_41 : i32 to vector<1x512xi32>
    %82 = arith.cmpi slt, %2, %81 : vector<1x512xi32>
    %83 = arith.andi %80, %82 : vector<1x512xi1>
    %cst_42 = arith.constant 1.000000e+00 : f32
    %cst_43 = arith.constant 0.000000e+00 : f32
    %84 = vector.broadcast %cst_42 : f32 to vector<1x512xf32>
    %85 = vector.broadcast %cst_43 : f32 to vector<1x512xf32>
    %86 = arith.select %83, %84, %85 : vector<1x512xi1>, vector<1x512xf32>
    %87 = vector.broadcast %86 : vector<1x512xf32> to vector<8x512xf32>
    %88 = arith.mulf %78, %87 : vector<8x512xf32>
    %c64 = arith.constant 64 : index
    %c0_44 = arith.constant 0 : index
    %89 = vector.load %arg11[%c64, %c0_44] : memref<72x512xf32, #tpu.memory_space<vmem>>, vector<8x512xf32>
    tpu.vector_store %arg11[%c64, %c0_44], %88 {strides = array<i32>} : memref<72x512xf32, #tpu.memory_space<vmem>>, vector<8x512xf32>,
    %c0_45 = arith.constant 0 : index
    %c0_46 = arith.constant 0 : index
    %90 = vector.load %arg11[%c0_45, %c0_46] : memref<72x512xf32, #tpu.memory_space<vmem>>, vector<72x512xf32>
    %91 = arith.truncf %90 : vector<72x512xf32> to vector<72x512xbf16>
    %cst_47 = arith.constant dense<0.000000e+00> : vector<8x512xf32>
    %92 = tpu.matmul %3, %91, %cst_47 {dimension_numbers = #tpu.dot_dimension_numbers<[1], [0], [0], [1], [0, 0, 1, 1], [], []>} : vector<8x72xbf16>, vector<72x512xbf16>, vector<8x512xf32> -> vector<8x512xf32>
    %93 = vector.broadcast %4 : vector<8x1xf32> to vector<8x512xf32>
    %94 = arith.addf %92, %93 : vector<8x512xf32>
    %cst_48 = arith.constant 0.000000e+00 : f32
    %95 = vector.broadcast %cst_48 : f32 to vector<8x512xf32>
    %96 = arith.maximumf %94, %95 : vector<8x512xf32>
    %c0_49 = arith.constant 0 : index
    %c0_50 = arith.constant 0 : index
    %97 = vector.load %arg5[%c0_49, %c0_50] : memref<8x1xf32, #tpu.memory_space<vmem>>, vector<8x1xf32>
    %c0_51 = arith.constant 0 : index
    %c0_52 = arith.constant 0 : index
    %98 = vector.load %arg6[%c0_51, %c0_52] : memref<8x1xf32, #tpu.memory_space<vmem>>, vector<8x1xf32>
    %99 = arith.mulf %96, %96 : vector<8x512xf32>
    %100 = tpu.concatenate %96, %99 in 0 : vector<8x512xf32>, vector<8x512xf32> -> vector<16x512xf32>
    %cst_53 = arith.constant dense<0.000000e+00> : vector<16xf32>
    %101 = vector.multi_reduction <add>, %100, %cst_53 [1] : vector<16x512xf32> to vector<16xf32>
    %102 = vector.shape_cast %101 : vector<16xf32> to vector<16x1xf32>
    %103 = vector.extract_strided_slice %102 {offsets = [0, 0], sizes = [8, 1], strides = [1, 1]} : vector<16x1xf32> to vector<8x1xf32>
    %cst_54 = arith.constant 0.001953125 : f32
    %104 = vector.broadcast %cst_54 : f32 to vector<8x1xf32>
    %105 = arith.mulf %103, %104 : vector<8x1xf32>
    %106 = vector.extract_strided_slice %102 {offsets = [8, 0], sizes = [8, 1], strides = [1, 1]} : vector<16x1xf32> to vector<8x1xf32>
    %cst_55 = arith.constant 0.001953125 : f32
    %107 = vector.broadcast %cst_55 : f32 to vector<8x1xf32>
    %108 = arith.mulf %106, %107 : vector<8x1xf32>
    %109 = arith.mulf %105, %105 : vector<8x1xf32>
    %110 = arith.subf %108, %109 : vector<8x1xf32>
    %cst_56 = arith.constant 9.99999974E-6 : f32
    %111 = vector.broadcast %cst_56 : f32 to vector<8x1xf32>
    %112 = arith.addf %110, %111 : vector<8x1xf32>
    %113 = math.rsqrt %112 : vector<8x1xf32>
    %114 = arith.mulf %97, %113 : vector<8x1xf32>
    %115 = arith.mulf %105, %114 : vector<8x1xf32>
    %116 = arith.subf %98, %115 : vector<8x1xf32>
    %117 = vector.broadcast %114 : vector<8x1xf32> to vector<8x512xf32>
    %118 = arith.mulf %96, %117 : vector<8x512xf32>
    %119 = vector.broadcast %116 : vector<8x1xf32> to vector<8x512xf32>
    %120 = arith.addf %118, %119 : vector<8x512xf32>
    %c0_57 = arith.constant 0 : index
    %c0_58 = arith.constant 0 : index
    %121 = vector.load %arg7[%c0_57, %c0_58] : memref<8x72xbf16, #tpu.memory_space<vmem>>, vector<8x72xbf16>
    %c17_i32_59 = arith.constant 17 : i32
    %122 = tpu.dynamic_rotate %120 by %c17_i32_59 dim 1 : vector<8x512xf32>, i32 -> vector<8x512xf32>
    %c0_i32_60 = arith.constant 0 : i32
    %123 = vector.broadcast %c0_i32_60 : i32 to vector<1x512xi32>
    %124 = arith.cmpi sgt, %1, %123 : vector<1x512xi32>
    %c0_i32_61 = arith.constant 0 : i32
    %125 = vector.broadcast %c0_i32_61 : i32 to vector<1x512xi32>
    %126 = arith.cmpi sgt, %2, %125 : vector<1x512xi32>
    %127 = arith.andi %124, %126 : vector<1x512xi1>
    %cst_62 = arith.constant 1.000000e+00 : f32
    %cst_63 = arith.constant 0.000000e+00 : f32
    %128 = vector.broadcast %cst_62 : f32 to vector<1x512xf32>
    %129 = vector.broadcast %cst_63 : f32 to vector<1x512xf32>
    %130 = arith.select %127, %128, %129 : vector<1x512xi1>, vector<1x512xf32>
    %131 = vector.broadcast %130 : vector<1x512xf32> to vector<8x512xf32>
    %132 = arith.mulf %122, %131 : vector<8x512xf32>
    %c0_64 = arith.constant 0 : index
    %c0_65 = arith.constant 0 : index
    %133 = vector.load %arg11[%c0_64, %c0_65] : memref<72x512xf32, #tpu.memory_space<vmem>>, vector<8x512xf32>
    tpu.vector_store %arg11[%c0_64, %c0_65], %132 {strides = array<i32>} : memref<72x512xf32, #tpu.memory_space<vmem>>, vector<8x512xf32>,
    %c16_i32_66 = arith.constant 16 : i32
    %134 = tpu.dynamic_rotate %120 by %c16_i32_66 dim 1 : vector<8x512xf32>, i32 -> vector<8x512xf32>
    %c0_i32_67 = arith.constant 0 : i32
    %135 = vector.broadcast %c0_i32_67 : i32 to vector<1x512xi32>
    %136 = arith.cmpi sgt, %1, %135 : vector<1x512xi32>
    %cst_68 = arith.constant 1.000000e+00 : f32
    %cst_69 = arith.constant 0.000000e+00 : f32
    %137 = vector.broadcast %cst_68 : f32 to vector<1x512xf32>
    %138 = vector.broadcast %cst_69 : f32 to vector<1x512xf32>
    %139 = arith.select %136, %137, %138 : vector<1x512xi1>, vector<1x512xf32>
    %140 = vector.broadcast %139 : vector<1x512xf32> to vector<8x512xf32>
    %141 = arith.mulf %134, %140 : vector<8x512xf32>
    %c8_70 = arith.constant 8 : index
    %c0_71 = arith.constant 0 : index
    %142 = vector.load %arg11[%c8_70, %c0_71] : memref<72x512xf32, #tpu.memory_space<vmem>>, vector<8x512xf32>
    tpu.vector_store %arg11[%c8_70, %c0_71], %141 {strides = array<i32>} : memref<72x512xf32, #tpu.memory_space<vmem>>, vector<8x512xf32>,
    %c15_i32_72 = arith.constant 15 : i32
    %143 = tpu.dynamic_rotate %120 by %c15_i32_72 dim 1 : vector<8x512xf32>, i32 -> vector<8x512xf32>
    %c0_i32_73 = arith.constant 0 : i32
    %144 = vector.broadcast %c0_i32_73 : i32 to vector<1x512xi32>
    %145 = arith.cmpi sgt, %1, %144 : vector<1x512xi32>
    %c15_i32_74 = arith.constant 15 : i32
    %146 = vector.broadcast %c15_i32_74 : i32 to vector<1x512xi32>
    %147 = arith.cmpi slt, %2, %146 : vector<1x512xi32>
    %148 = arith.andi %145, %147 : vector<1x512xi1>
    %cst_75 = arith.constant 1.000000e+00 : f32
    %cst_76 = arith.constant 0.000000e+00 : f32
    %149 = vector.broadcast %cst_75 : f32 to vector<1x512xf32>
    %150 = vector.broadcast %cst_76 : f32 to vector<1x512xf32>
    %151 = arith.select %148, %149, %150 : vector<1x512xi1>, vector<1x512xf32>
    %152 = vector.broadcast %151 : vector<1x512xf32> to vector<8x512xf32>
    %153 = arith.mulf %143, %152 : vector<8x512xf32>
    %c16_77 = arith.constant 16 : index
    %c0_78 = arith.constant 0 : index
    %154 = vector.load %arg11[%c16_77, %c0_78] : memref<72x512xf32, #tpu.memory_space<vmem>>, vector<8x512xf32>
    tpu.vector_store %arg11[%c16_77, %c0_78], %153 {strides = array<i32>} : memref<72x512xf32, #tpu.memory_space<vmem>>, vector<8x512xf32>,
    %c1_i32_79 = arith.constant 1 : i32
    %155 = tpu.dynamic_rotate %120 by %c1_i32_79 dim 1 : vector<8x512xf32>, i32 -> vector<8x512xf32>
    %c0_i32_80 = arith.constant 0 : i32
    %156 = vector.broadcast %c0_i32_80 : i32 to vector<1x512xi32>
    %157 = arith.cmpi sgt, %2, %156 : vector<1x512xi32>
    %cst_81 = arith.constant 1.000000e+00 : f32
    %cst_82 = arith.constant 0.000000e+00 : f32
    %158 = vector.broadcast %cst_81 : f32 to vector<1x512xf32>
    %159 = vector.broadcast %cst_82 : f32 to vector<1x512xf32>
    %160 = arith.select %157, %158, %159 : vector<1x512xi1>, vector<1x512xf32>
    %161 = vector.broadcast %160 : vector<1x512xf32> to vector<8x512xf32>
    %162 = arith.mulf %155, %161 : vector<8x512xf32>
    %c24_83 = arith.constant 24 : index
    %c0_84 = arith.constant 0 : index
    %163 = vector.load %arg11[%c24_83, %c0_84] : memref<72x512xf32, #tpu.memory_space<vmem>>, vector<8x512xf32>
    tpu.vector_store %arg11[%c24_83, %c0_84], %162 {strides = array<i32>} : memref<72x512xf32, #tpu.memory_space<vmem>>, vector<8x512xf32>,
    %c32_85 = arith.constant 32 : index
    %c0_86 = arith.constant 0 : index
    %164 = vector.load %arg11[%c32_85, %c0_86] : memref<72x512xf32, #tpu.memory_space<vmem>>, vector<8x512xf32>
    tpu.vector_store %arg11[%c32_85, %c0_86], %120 {strides = array<i32>} : memref<72x512xf32, #tpu.memory_space<vmem>>, vector<8x512xf32>,
    %c511_i32_87 = arith.constant 511 : i32
    %165 = tpu.dynamic_rotate %120 by %c511_i32_87 dim 1 : vector<8x512xf32>, i32 -> vector<8x512xf32>
    %c15_i32_88 = arith.constant 15 : i32
    %166 = vector.broadcast %c15_i32_88 : i32 to vector<1x512xi32>
    %167 = arith.cmpi slt, %2, %166 : vector<1x512xi32>
    %cst_89 = arith.constant 1.000000e+00 : f32
    %cst_90 = arith.constant 0.000000e+00 : f32
    %168 = vector.broadcast %cst_89 : f32 to vector<1x512xf32>
    %169 = vector.broadcast %cst_90 : f32 to vector<1x512xf32>
    %170 = arith.select %167, %168, %169 : vector<1x512xi1>, vector<1x512xf32>
    %171 = vector.broadcast %170 : vector<1x512xf32> to vector<8x512xf32>
    %172 = arith.mulf %165, %171 : vector<8x512xf32>
    %c40_91 = arith.constant 40 : index
    %c0_92 = arith.constant 0 : index
    %173 = vector.load %arg11[%c40_91, %c0_92] : memref<72x512xf32, #tpu.memory_space<vmem>>, vector<8x512xf32>
    tpu.vector_store %arg11[%c40_91, %c0_92], %172 {strides = array<i32>} : memref<72x512xf32, #tpu.memory_space<vmem>>, vector<8x512xf32>,
    %c497_i32_93 = arith.constant 497 : i32
    %174 = tpu.dynamic_rotate %120 by %c497_i32_93 dim 1 : vector<8x512xf32>, i32 -> vector<8x512xf32>
    %c15_i32_94 = arith.constant 15 : i32
    %175 = vector.broadcast %c15_i32_94 : i32 to vector<1x512xi32>
    %176 = arith.cmpi slt, %1, %175 : vector<1x512xi32>
    %c0_i32_95 = arith.constant 0 : i32
    %177 = vector.broadcast %c0_i32_95 : i32 to vector<1x512xi32>
    %178 = arith.cmpi sgt, %2, %177 : vector<1x512xi32>
    %179 = arith.andi %176, %178 : vector<1x512xi1>
    %cst_96 = arith.constant 1.000000e+00 : f32
    %cst_97 = arith.constant 0.000000e+00 : f32
    %180 = vector.broadcast %cst_96 : f32 to vector<1x512xf32>
    %181 = vector.broadcast %cst_97 : f32 to vector<1x512xf32>
    %182 = arith.select %179, %180, %181 : vector<1x512xi1>, vector<1x512xf32>
    %183 = vector.broadcast %182 : vector<1x512xf32> to vector<8x512xf32>
    %184 = arith.mulf %174, %183 : vector<8x512xf32>
    %c48_98 = arith.constant 48 : index
    %c0_99 = arith.constant 0 : index
    %185 = vector.load %arg11[%c48_98, %c0_99] : memref<72x512xf32, #tpu.memory_space<vmem>>, vector<8x512xf32>
    tpu.vector_store %arg11[%c48_98, %c0_99], %184 {strides = array<i32>} : memref<72x512xf32, #tpu.memory_space<vmem>>, vector<8x512xf32>,
    %c496_i32_100 = arith.constant 496 : i32
    %186 = tpu.dynamic_rotate %120 by %c496_i32_100 dim 1 : vector<8x512xf32>, i32 -> vector<8x512xf32>
    %c15_i32_101 = arith.constant 15 : i32
    %187 = vector.broadcast %c15_i32_101 : i32 to vector<1x512xi32>
    %188 = arith.cmpi slt, %1, %187 : vector<1x512xi32>
    %cst_102 = arith.constant 1.000000e+00 : f32
    %cst_103 = arith.constant 0.000000e+00 : f32
    %189 = vector.broadcast %cst_102 : f32 to vector<1x512xf32>
    %190 = vector.broadcast %cst_103 : f32 to vector<1x512xf32>
    %191 = arith.select %188, %189, %190 : vector<1x512xi1>, vector<1x512xf32>
    %192 = vector.broadcast %191 : vector<1x512xf32> to vector<8x512xf32>
    %193 = arith.mulf %186, %192 : vector<8x512xf32>
    %c56_104 = arith.constant 56 : index
    %c0_105 = arith.constant 0 : index
    %194 = vector.load %arg11[%c56_104, %c0_105] : memref<72x512xf32, #tpu.memory_space<vmem>>, vector<8x512xf32>
    tpu.vector_store %arg11[%c56_104, %c0_105], %193 {strides = array<i32>} : memref<72x512xf32, #tpu.memory_space<vmem>>, vector<8x512xf32>,
    %c495_i32_106 = arith.constant 495 : i32
    %195 = tpu.dynamic_rotate %120 by %c495_i32_106 dim 1 : vector<8x512xf32>, i32 -> vector<8x512xf32>
    %c15_i32_107 = arith.constant 15 : i32
    %196 = vector.broadcast %c15_i32_107 : i32 to vector<1x512xi32>
    %197 = arith.cmpi slt, %1, %196 : vector<1x512xi32>
    %c15_i32_108 = arith.constant 15 : i32
    %198 = vector.broadcast %c15_i32_108 : i32 to vector<1x512xi32>
    %199 = arith.cmpi slt, %2, %198 : vector<1x512xi32>
    %200 = arith.andi %197, %199 : vector<1x512xi1>
    %cst_109 = arith.constant 1.000000e+00 : f32
    %cst_110 = arith.constant 0.000000e+00 : f32
    %201 = vector.broadcast %cst_109 : f32 to vector<1x512xf32>
    %202 = vector.broadcast %cst_110 : f32 to vector<1x512xf32>
    %203 = arith.select %200, %201, %202 : vector<1x512xi1>, vector<1x512xf32>
    %204 = vector.broadcast %203 : vector<1x512xf32> to vector<8x512xf32>
    %205 = arith.mulf %195, %204 : vector<8x512xf32>
    %c64_111 = arith.constant 64 : index
    %c0_112 = arith.constant 0 : index
    %206 = vector.load %arg11[%c64_111, %c0_112] : memref<72x512xf32, #tpu.memory_space<vmem>>, vector<8x512xf32>
    tpu.vector_store %arg11[%c64_111, %c0_112], %205 {strides = array<i32>} : memref<72x512xf32, #tpu.memory_space<vmem>>, vector<8x512xf32>,
    %c0_113 = arith.constant 0 : index
    %c0_114 = arith.constant 0 : index
    %207 = vector.load %arg11[%c0_113, %c0_114] : memref<72x512xf32, #tpu.memory_space<vmem>>, vector<72x512xf32>
    %208 = arith.truncf %207 : vector<72x512xf32> to vector<72x512xbf16>
    %cst_115 = arith.constant dense<0.000000e+00> : vector<8x512xf32>
    %209 = tpu.matmul %121, %208, %cst_115 {dimension_numbers = #tpu.dot_dimension_numbers<[1], [0], [0], [1], [0, 0, 1, 1], [], []>} : vector<8x72xbf16>, vector<72x512xbf16>, vector<8x512xf32> -> vector<8x512xf32>
    %c0_116 = arith.constant 0 : index
    %c0_117 = arith.constant 0 : index
    %210 = vector.load %arg8[%c0_116, %c0_117] : memref<8x1xf32, #tpu.memory_space<vmem>>, vector<8x1xf32>
    %c0_118 = arith.constant 0 : index
    %c0_119 = arith.constant 0 : index
    %211 = vector.load %arg9[%c0_118, %c0_119] : memref<8x1xf32, #tpu.memory_space<vmem>>, vector<8x1xf32>
    %212 = arith.mulf %209, %209 : vector<8x512xf32>
    %213 = tpu.concatenate %209, %212 in 0 : vector<8x512xf32>, vector<8x512xf32> -> vector<16x512xf32>
    %cst_120 = arith.constant dense<0.000000e+00> : vector<16xf32>
    %214 = vector.multi_reduction <add>, %213, %cst_120 [1] : vector<16x512xf32> to vector<16xf32>
    %215 = vector.shape_cast %214 : vector<16xf32> to vector<16x1xf32>
    %216 = vector.extract_strided_slice %215 {offsets = [0, 0], sizes = [8, 1], strides = [1, 1]} : vector<16x1xf32> to vector<8x1xf32>
    %cst_121 = arith.constant 0.001953125 : f32
    %217 = vector.broadcast %cst_121 : f32 to vector<8x1xf32>
    %218 = arith.mulf %216, %217 : vector<8x1xf32>
    %219 = vector.extract_strided_slice %215 {offsets = [8, 0], sizes = [8, 1], strides = [1, 1]} : vector<16x1xf32> to vector<8x1xf32>
    %cst_122 = arith.constant 0.001953125 : f32
    %220 = vector.broadcast %cst_122 : f32 to vector<8x1xf32>
    %221 = arith.mulf %219, %220 : vector<8x1xf32>
    %222 = arith.mulf %218, %218 : vector<8x1xf32>
    %223 = arith.subf %221, %222 : vector<8x1xf32>
    %cst_123 = arith.constant 9.99999974E-6 : f32
    %224 = vector.broadcast %cst_123 : f32 to vector<8x1xf32>
    %225 = arith.addf %223, %224 : vector<8x1xf32>
    %226 = math.rsqrt %225 : vector<8x1xf32>
    %227 = arith.mulf %210, %226 : vector<8x1xf32>
    %228 = arith.mulf %218, %227 : vector<8x1xf32>
    %229 = arith.subf %211, %228 : vector<8x1xf32>
    %230 = vector.broadcast %227 : vector<8x1xf32> to vector<8x512xf32>
    %231 = arith.mulf %209, %230 : vector<8x512xf32>
    %232 = vector.broadcast %229 : vector<8x1xf32> to vector<8x512xf32>
    %233 = arith.addf %231, %232 : vector<8x512xf32>
    %234 = arith.addf %233, %0 : vector<8x512xf32>
    %cst_124 = arith.constant 0.000000e+00 : f32
    %235 = vector.broadcast %cst_124 : f32 to vector<8x512xf32>
    %236 = arith.maximumf %234, %235 : vector<8x512xf32>
    %c0_125 = arith.constant 0 : index
    %c0_126 = arith.constant 0 : index
    %237 = vector.load %arg10[%c0_125, %c0_126] : memref<8x512xf32, #tpu.memory_space<vmem>>, vector<8x512xf32>
    tpu.vector_store %arg10[%c0_125, %c0_126], %236 {strides = array<i32>} : memref<8x512xf32, #tpu.memory_space<vmem>>, vector<8x512xf32>,
    return
  }
}

</mosaic_0001>

<llo_original>
// kernel: residual_block.1
$region0: #{residual_block.1}
  #allocation0 [shape = 'u32[]', space=smem, size = 0x4, offset = 0x4, fixed_abs, tag = 'smem constant byte address 0x4 - core index']
  #allocation1 [shape = 'u32[144,128]{1,0:T(1,128)}', space=vmem, size = 0x12000, scoped, tag = 'internal scratch']
  #allocation2 [shape = 'f32[72,512]{1,0:T(8,128)}', space=vmem, size = 0x24000, scoped, tag = 'scratch operand']
  %s0 = inlined_call_operand.vmem [shape: f32[8,512], index: 0, kind: input, shape index: {}]
  %s1 = inlined_call_operand.vmem [shape: s32[1,512], index: 1, kind: input, shape index: {}]
  %s2 = inlined_call_operand.vmem [shape: s32[1,512], index: 2, kind: input, shape index: {}]
  %s3 = inlined_call_operand.vmem [shape: bf16[8,72], index: 3, kind: input, shape index: {}]
  %s4 = inlined_call_operand.vmem [shape: f32[8,1], index: 4, kind: input, shape index: {}]
  %s5 = inlined_call_operand.vmem [shape: f32[8,1], index: 5, kind: input, shape index: {}]
  %s6 = inlined_call_operand.vmem [shape: f32[8,1], index: 6, kind: input, shape index: {}]
  %s7 = inlined_call_operand.vmem [shape: bf16[8,72], index: 7, kind: input, shape index: {}]
  %s8 = inlined_call_operand.vmem [shape: f32[8,1], index: 8, kind: input, shape index: {}]
  %s9 = inlined_call_operand.vmem [shape: f32[8,1], index: 9, kind: input, shape index: {}]
  %s10 = inlined_call_operand.vmem [shape: f32[8,512], index: 10, kind: output, shape index: {}]
  %s11 = sld [smem:[#allocation0]]
  $region50: #{residual_block.1} parent=0
    _
  %s13 = ssub.s32 1, %s11
  %s14 = scalar_select 0, %s13, %s11
  // Predicated region
  $region2: #{residual_block.1} parent=0 // pred_check
    _
  $region3: #{residual_block.1} parent=0 // pred_check_branch
    %16 = sbr.rel (0) target = $region5
  $region4: #{residual_block.1} parent=0 // pred_region
    _
  $region5: #{residual_block.1} parent=0 // pred_fallthru
    _
  // Predicated region
  $region6: #{residual_block.1} parent=0 // pred_check
    _
  $region7: #{residual_block.1} parent=0 // pred_check_branch
    %18 = sbr.rel (0) target = $region9
  $region8: #{residual_block.1} parent=0 // pred_region
    _
  $region9: #{residual_block.1} parent=0 // pred_fallthru
    _
  // Predicated region
  $region10: #{residual_block.1} parent=0 // pred_check
    _
  $region11: #{residual_block.1} parent=0 // pred_check_branch
    %20 = sbr.rel (0) target = $region13
  $region12: #{residual_block.1} parent=0 // pred_region
    _
  $region13: #{residual_block.1} parent=0 // pred_fallthru
    _
  // Predicated region
  $region14: #{residual_block.1} parent=0 // pred_check
    _
  $region15: #{residual_block.1} parent=0 // pred_check_branch
    %22 = sbr.rel (0) target = $region17
  $region16: #{residual_block.1} parent=0 // pred_region
    _
  $region17: #{residual_block.1} parent=0 // pred_fallthru
    _
  // Predicated region
  $region18: #{residual_block.1} parent=0 // pred_check
    _
  $region19: #{residual_block.1} parent=0 // pred_check_branch
    %24 = sbr.rel (0) target = $region21
  $region20: #{residual_block.1} parent=0 // pred_region
    _
  $region21: #{residual_block.1} parent=0 // pred_fallthru
    _
  // Predicated region
  $region22: #{residual_block.1} parent=0 // pred_check
    _
  $region23: #{residual_block.1} parent=0 // pred_check_branch
    %26 = sbr.rel (0) target = $region25
  $region24: #{residual_block.1} parent=0 // pred_region
    _
  $region25: #{residual_block.1} parent=0 // pred_fallthru
    _
  // Predicated region
  $region26: #{residual_block.1} parent=0 // pred_check
    _
  $region27: #{residual_block.1} parent=0 // pred_check_branch
    %28 = sbr.rel (0) target = $region29
  $region28: #{residual_block.1} parent=0 // pred_region
    _
  $region29: #{residual_block.1} parent=0 // pred_fallthru
    _
  // Predicated region
  $region30: #{residual_block.1} parent=0 // pred_check
    _
  $region31: #{residual_block.1} parent=0 // pred_check_branch
    %30 = sbr.rel (0) target = $region33
  $region32: #{residual_block.1} parent=0 // pred_region
    _
  $region33: #{residual_block.1} parent=0 // pred_fallthru
    _
  // Predicated region
  $region34: #{residual_block.1} parent=0 // pred_check
    _
  $region35: #{residual_block.1} parent=0 // pred_check_branch
    %32 = sbr.rel (0) target = $region37
  $region36: #{residual_block.1} parent=0 // pred_region
    _
  $region37: #{residual_block.1} parent=0 // pred_fallthru
    _
  // Predicated region
  $region38: #{residual_block.1} parent=0 // pred_check
    _
  $region39: #{residual_block.1} parent=0 // pred_check_branch
    %34 = sbr.rel (0) target = $region41
  $region40: #{residual_block.1} parent=0 // pred_region
    _
  $region41: #{residual_block.1} parent=0 // pred_fallthru
    _
  %v36 = vld [vmem:[%s0] sm:$0xff]
  %v37 = vld [vmem:[%s0 + $0x8] sm:$0xff]
  %v38 = vld [vmem:[%s0 + $0x10] sm:$0xff]
  %v39 = vld [vmem:[%s0 + $0x18] sm:$0xff]
  %v40 = vld [vmem:[%s1] sm:$0xf]
  %v41 = vld [vmem:[%s2] sm:$0xf]
  %v42 = vld [vmem:[%s3] sm:$0xf]
  %v43 = vld [vmem:[%s4] sm:$0xff]
  %44 = vrot.lane.b32.xlu0 %v36, 17
  %v45 = vpop.permute.xlu0 %44
  %46 = vrot.lane.b32.xlu0 %v37, 17
  %v47 = vpop.permute.xlu0 %46
  %48 = vrot.lane.b32.xlu0 %v38, 17
  %v49 = vpop.permute.xlu0 %48
  %50 = vrot.lane.b32.xlu0 %v39, 17
  %v51 = vpop.permute.xlu0 %50
  %v52 = vlaneseq
  %v53 = vand.u32 %v52, 127
  %vm54 = vcmp.lt.s32.totalorder %v53, 17
  %v55 = vsel %vm54, %v49, %v51
  %v56 = vsel %vm54, %v47, %v49
  %v57 = vsel %vm54, %v45, %v47
  %v58 = vsel %vm54, %v51, %v45
  %vm59 = vcmp.gt.s32.totalorder %v40, 0
  %vm60 = vcmp.gt.s32.totalorder %v41, 0
  %vm61 = vmand %vm59, %vm60
  %v62 = vsel %vm61, 1.0, 0.0
  %v64 = vlaneseq
  %v65 = vshrl.u32 %v64, 7
  %v66 = vsub.s32 0, %v65
  %v67 = vrot.slane %v62, %v66
  %v68 = vlaneseq
  %v69 = vshrl.u32 %v68, 7
  %v70 = vsub.s32 1, %v69
  %v71 = vrot.slane %v62, %v70
  %v72 = vlaneseq
  %v73 = vshrl.u32 %v72, 7
  %v74 = vsub.s32 2, %v73
  %v75 = vrot.slane %v62, %v74
  %v76 = vlaneseq
  %v77 = vshrl.u32 %v76, 7
  %v78 = vsub.s32 3, %v77
  %v79 = vrot.slane %v62, %v78
  %v84 = vmul.f32 %v58, %v67
  %v85 = vmul.f32 %v57, %v71
  %v86 = vmul.f32 %v56, %v75
  %v87 = vmul.f32 %v55, %v79
  %88 = vst [vmem:[#allocation2] sm:$0xff] %v84
  %89 = vst [vmem:[#allocation2 + $0x8] sm:$0xff] %v85
  %90 = vst [vmem:[#allocation2 + $0x10] sm:$0xff] %v86
  %91 = vst [vmem:[#allocation2 + $0x18] sm:$0xff] %v87
  %92 = vrot.lane.b32.xlu0 %v36, 16
  %v93 = vpop.permute.xlu0 %92
  %94 = vrot.lane.b32.xlu0 %v37, 16
  %v95 = vpop.permute.xlu0 %94
  %96 = vrot.lane.b32.xlu0 %v38, 16
  %v97 = vpop.permute.xlu0 %96
  %98 = vrot.lane.b32.xlu0 %v39, 16
  %v99 = vpop.permute.xlu0 %98
  %vm100 = vcmp.lt.s32.totalorder %v53, 16
  %v101 = vsel %vm100, %v97, %v99
  %v102 = vsel %vm100, %v95, %v97
  %v103 = vsel %vm100, %v93, %v95
  %v104 = vsel %vm100, %v99, %v93
  %v105 = vsel %vm59, 1.0, 0.0
  %v107 = vlaneseq
  %v108 = vshrl.u32 %v107, 7
  %v109 = vsub.s32 0, %v108
  %v110 = vrot.slane %v105, %v109
  %v111 = vlaneseq
  %v112 = vshrl.u32 %v111, 7
  %v113 = vsub.s32 1, %v112
  %v114 = vrot.slane %v105, %v113
  %v115 = vlaneseq
  %v116 = vshrl.u32 %v115, 7
  %v117 = vsub.s32 2, %v116
  %v118 = vrot.slane %v105, %v117
  %v119 = vlaneseq
  %v120 = vshrl.u32 %v119, 7
  %v121 = vsub.s32 3, %v120
  %v122 = vrot.slane %v105, %v121
  %v127 = vmul.f32 %v104, %v110
  %v128 = vmul.f32 %v103, %v114
  %v129 = vmul.f32 %v102, %v118
  %v130 = vmul.f32 %v101, %v122
  %131 = vst [vmem:[#allocation2 + $0x20] sm:$0xff] %v127
  %132 = vst [vmem:[#allocation2 + $0x28] sm:$0xff] %v128
  %133 = vst [vmem:[#allocation2 + $0x30] sm:$0xff] %v129
  %134 = vst [vmem:[#allocation2 + $0x38] sm:$0xff] %v130
  %135 = vrot.lane.b32.xlu0 %v36, 15
  %v136 = vpop.permute.xlu0 %135
  %137 = vrot.lane.b32.xlu0 %v37, 15
  %v138 = vpop.permute.xlu0 %137
  %139 = vrot.lane.b32.xlu0 %v38, 15
  %v140 = vpop.permute.xlu0 %139
  %141 = vrot.lane.b32.xlu0 %v39, 15
  %v142 = vpop.permute.xlu0 %141
  %vm143 = vcmp.lt.s32.totalorder %v53, 15
  %v144 = vsel %vm143, %v140, %v142
  %v145 = vsel %vm143, %v138, %v140
  %v146 = vsel %vm143, %v136, %v138
  %v147 = vsel %vm143, %v142, %v136
  %vm148 = vcmp.lt.s32.totalorder %v41, 15
  %vm149 = vmand %vm59, %vm148
  %v150 = vsel %vm149, 1.0, 0.0
  %v152 = vlaneseq
  %v153 = vshrl.u32 %v152, 7
  %v154 = vsub.s32 0, %v153
  %v155 = vrot.slane %v150, %v154
  %v156 = vlaneseq
  %v157 = vshrl.u32 %v156, 7
  %v158 = vsub.s32 1, %v157
  %v159 = vrot.slane %v150, %v158
  %v160 = vlaneseq
  %v161 = vshrl.u32 %v160, 7
  %v162 = vsub.s32 2, %v161
  %v163 = vrot.slane %v150, %v162
  %v164 = vlaneseq
  %v165 = vshrl.u32 %v164, 7
  %v166 = vsub.s32 3, %v165
  %v167 = vrot.slane %v150, %v166
  %v172 = vmul.f32 %v147, %v155
  %v173 = vmul.f32 %v146, %v159
  %v174 = vmul.f32 %v145, %v163
  %v175 = vmul.f32 %v144, %v167
  %176 = vst [vmem:[#allocation2 + $0x40] sm:$0xff] %v172
  %177 = vst [vmem:[#allocation2 + $0x48] sm:$0xff] %v173
  %178 = vst [vmem:[#allocation2 + $0x50] sm:$0xff] %v174
  %179 = vst [vmem:[#allocation2 + $0x58] sm:$0xff] %v175
  %180 = vrot.lane.b32.xlu0 %v36, 1
  %v181 = vpop.permute.xlu0 %180
  %182 = vrot.lane.b32.xlu0 %v37, 1
  %v183 = vpop.permute.xlu0 %182
  %184 = vrot.lane.b32.xlu0 %v38, 1
  %v185 = vpop.permute.xlu0 %184
  %186 = vrot.lane.b32.xlu0 %v39, 1
  %v187 = vpop.permute.xlu0 %186
  %vm188 = vcmp.lt.s32.totalorder %v53, 1
  %v189 = vsel %vm188, %v185, %v187
  %v190 = vsel %vm188, %v183, %v185
  %v191 = vsel %vm188, %v181, %v183
  %v192 = vsel %vm188, %v187, %v181
  %v193 = vsel %vm60, 1.0, 0.0
  %v195 = vlaneseq
  %v196 = vshrl.u32 %v195, 7
  %v197 = vsub.s32 0, %v196
  %v198 = vrot.slane %v193, %v197
  %v199 = vlaneseq
  %v200 = vshrl.u32 %v199, 7
  %v201 = vsub.s32 1, %v200
  %v202 = vrot.slane %v193, %v201
  %v203 = vlaneseq
  %v204 = vshrl.u32 %v203, 7
  %v205 = vsub.s32 2, %v204
  %v206 = vrot.slane %v193, %v205
  %v207 = vlaneseq
  %v208 = vshrl.u32 %v207, 7
  %v209 = vsub.s32 3, %v208
  %v210 = vrot.slane %v193, %v209
  %v215 = vmul.f32 %v192, %v198
  %v216 = vmul.f32 %v191, %v202
  %v217 = vmul.f32 %v190, %v206
  %v218 = vmul.f32 %v189, %v210
  %219 = vst [vmem:[#allocation2 + $0x60] sm:$0xff] %v215
  %220 = vst [vmem:[#allocation2 + $0x68] sm:$0xff] %v216
  %221 = vst [vmem:[#allocation2 + $0x70] sm:$0xff] %v217
  %222 = vst [vmem:[#allocation2 + $0x78] sm:$0xff] %v218
  %223 = vst [vmem:[#allocation2 + $0x80] sm:$0xff] %v36
  %224 = vst [vmem:[#allocation2 + $0x88] sm:$0xff] %v37
  %225 = vst [vmem:[#allocation2 + $0x90] sm:$0xff] %v38
  %226 = vst [vmem:[#allocation2 + $0x98] sm:$0xff] %v39
  %227 = vrot.lane.b32.xlu0 %v36, 127
  %v228 = vpop.permute.xlu0 %227
  %229 = vrot.lane.b32.xlu0 %v37, 127
  %v230 = vpop.permute.xlu0 %229
  %231 = vrot.lane.b32.xlu0 %v38, 127
  %v232 = vpop.permute.xlu0 %231
  %233 = vrot.lane.b32.xlu0 %v39, 127
  %v234 = vpop.permute.xlu0 %233
  %vm235 = vcmp.lt.s32.totalorder %v53, 127
  %v236 = vsel %vm235, %v232, %v234
  %v237 = vsel %vm235, %v230, %v232
  %v238 = vsel %vm235, %v228, %v230
  %v239 = vsel %vm235, %v234, %v228
  %v240 = vsel %vm148, 1.0, 0.0
  %v242 = vlaneseq
  %v243 = vshrl.u32 %v242, 7
  %v244 = vsub.s32 0, %v243
  %v245 = vrot.slane %v240, %v244
  %v246 = vlaneseq
  %v247 = vshrl.u32 %v246, 7
  %v248 = vsub.s32 1, %v247
  %v249 = vrot.slane %v240, %v248
  %v250 = vlaneseq
  %v251 = vshrl.u32 %v250, 7
  %v252 = vsub.s32 2, %v251
  %v253 = vrot.slane %v240, %v252
  %v254 = vlaneseq
  %v255 = vshrl.u32 %v254, 7
  %v256 = vsub.s32 3, %v255
  %v257 = vrot.slane %v240, %v256
  %v262 = vmul.f32 %v238, %v245
  %v263 = vmul.f32 %v237, %v249
  %v264 = vmul.f32 %v236, %v253
  %v265 = vmul.f32 %v239, %v257
  %266 = vst [vmem:[#allocation2 + $0xa0] sm:$0xff] %v262
  %267 = vst [vmem:[#allocation2 + $0xa8] sm:$0xff] %v263
  %268 = vst [vmem:[#allocation2 + $0xb0] sm:$0xff] %v264
  %269 = vst [vmem:[#allocation2 + $0xb8] sm:$0xff] %v265
  %270 = vrot.lane.b32.xlu0 %v36, 113
  %v271 = vpop.permute.xlu0 %270
  %272 = vrot.lane.b32.xlu0 %v37, 113
  %v273 = vpop.permute.xlu0 %272
  %274 = vrot.lane.b32.xlu0 %v38, 113
  %v275 = vpop.permute.xlu0 %274
  %276 = vrot.lane.b32.xlu0 %v39, 113
  %v277 = vpop.permute.xlu0 %276
  %vm278 = vcmp.lt.s32.totalorder %v53, 113
  %v279 = vsel %vm278, %v275, %v277
  %v280 = vsel %vm278, %v273, %v275
  %v281 = vsel %vm278, %v271, %v273
  %v282 = vsel %vm278, %v277, %v271
  %vm283 = vcmp.lt.s32.totalorder %v40, 15
  %vm284 = vmand %vm283, %vm60
  %v285 = vsel %vm284, 1.0, 0.0
  %v287 = vlaneseq
  %v288 = vshrl.u32 %v287, 7
  %v289 = vsub.s32 0, %v288
  %v290 = vrot.slane %v285, %v289
  %v291 = vlaneseq
  %v292 = vshrl.u32 %v291, 7
  %v293 = vsub.s32 1, %v292
  %v294 = vrot.slane %v285, %v293
  %v295 = vlaneseq
  %v296 = vshrl.u32 %v295, 7
  %v297 = vsub.s32 2, %v296
  %v298 = vrot.slane %v285, %v297
  %v299 = vlaneseq
  %v300 = vshrl.u32 %v299, 7
  %v301 = vsub.s32 3, %v300
  %v302 = vrot.slane %v285, %v301
  %v307 = vmul.f32 %v281, %v290
  %v308 = vmul.f32 %v280, %v294
  %v309 = vmul.f32 %v279, %v298
  %v310 = vmul.f32 %v282, %v302
  %311 = vst [vmem:[#allocation2 + $0xc0] sm:$0xff] %v307
  %312 = vst [vmem:[#allocation2 + $0xc8] sm:$0xff] %v308
  %313 = vst [vmem:[#allocation2 + $0xd0] sm:$0xff] %v309
  %314 = vst [vmem:[#allocation2 + $0xd8] sm:$0xff] %v310
  %315 = vrot.lane.b32.xlu0 %v36, 112
  %v316 = vpop.permute.xlu0 %315
  %317 = vrot.lane.b32.xlu0 %v37, 112
  %v318 = vpop.permute.xlu0 %317
  %319 = vrot.lane.b32.xlu0 %v38, 112
  %v320 = vpop.permute.xlu0 %319
  %321 = vrot.lane.b32.xlu0 %v39, 112
  %v322 = vpop.permute.xlu0 %321
  %vm323 = vcmp.lt.s32.totalorder %v53, 112
  %v324 = vsel %vm323, %v320, %v322
  %v325 = vsel %vm323, %v318, %v320
  %v326 = vsel %vm323, %v316, %v318
  %v327 = vsel %vm323, %v322, %v316
  %v328 = vsel %vm283, 1.0, 0.0
  %v330 = vlaneseq
  %v331 = vshrl.u32 %v330, 7
  %v332 = vsub.s32 0, %v331
  %v333 = vrot.slane %v328, %v332
  %v334 = vlaneseq
  %v335 = vshrl.u32 %v334, 7
  %v336 = vsub.s32 1, %v335
  %v337 = vrot.slane %v328, %v336
  %v338 = vlaneseq
  %v339 = vshrl.u32 %v338, 7
  %v340 = vsub.s32 2, %v339
  %v341 = vrot.slane %v328, %v340
  %v342 = vlaneseq
  %v343 = vshrl.u32 %v342, 7
  %v344 = vsub.s32 3, %v343
  %v345 = vrot.slane %v328, %v344
  %v350 = vmul.f32 %v326, %v333
  %v351 = vmul.f32 %v325, %v337
  %v352 = vmul.f32 %v324, %v341
  %v353 = vmul.f32 %v327, %v345
  %354 = vst [vmem:[#allocation2 + $0xe0] sm:$0xff] %v350
  %355 = vst [vmem:[#allocation2 + $0xe8] sm:$0xff] %v351
  %356 = vst [vmem:[#allocation2 + $0xf0] sm:$0xff] %v352
  %357 = vst [vmem:[#allocation2 + $0xf8] sm:$0xff] %v353
  %358 = vrot.lane.b32.xlu0 %v36, 111
  %v359 = vpop.permute.xlu0 %358
  %360 = vrot.lane.b32.xlu0 %v37, 111
  %v361 = vpop.permute.xlu0 %360
  %362 = vrot.lane.b32.xlu0 %v38, 111
  %v363 = vpop.permute.xlu0 %362
  %364 = vrot.lane.b32.xlu0 %v39, 111
  %v365 = vpop.permute.xlu0 %364
  %vm366 = vcmp.lt.s32.totalorder %v53, 111
  %v367 = vsel %vm366, %v363, %v365
  %v368 = vsel %vm366, %v361, %v363
  %v369 = vsel %vm366, %v359, %v361
  %v370 = vsel %vm366, %v365, %v359
  %vm371 = vmand %vm283, %vm148
  %v372 = vsel %vm371, 1.0, 0.0
  %v374 = vlaneseq
  %v375 = vshrl.u32 %v374, 7
  %v376 = vsub.s32 0, %v375
  %v377 = vrot.slane %v372, %v376
  %v378 = vlaneseq
  %v379 = vshrl.u32 %v378, 7
  %v380 = vsub.s32 1, %v379
  %v381 = vrot.slane %v372, %v380
  %v382 = vlaneseq
  %v383 = vshrl.u32 %v382, 7
  %v384 = vsub.s32 2, %v383
  %v385 = vrot.slane %v372, %v384
  %v386 = vlaneseq
  %v387 = vshrl.u32 %v386, 7
  %v388 = vsub.s32 3, %v387
  %v389 = vrot.slane %v372, %v388
  %v394 = vmul.f32 %v369, %v377
  %v395 = vmul.f32 %v368, %v381
  %v396 = vmul.f32 %v367, %v385
  %v397 = vmul.f32 %v370, %v389
  %398 = vst [vmem:[#allocation2 + $0x100] sm:$0xff] %v394
  %399 = vst [vmem:[#allocation2 + $0x108] sm:$0xff] %v395
  %400 = vst [vmem:[#allocation2 + $0x110] sm:$0xff] %v396
  %401 = vst [vmem:[#allocation2 + $0x118] sm:$0xff] %v397
  %v402 = vld [vmem:[#allocation2] sm:$0xff]
  %v403 = vld [vmem:[#allocation2 + $0x8] sm:$0xff]
  %v404 = vld [vmem:[#allocation2 + $0x10] sm:$0xff]
  %v405 = vld [vmem:[#allocation2 + $0x18] sm:$0xff]
  %v406 = vld [vmem:[#allocation2 + $0x20] sm:$0xff]
  %v407 = vld [vmem:[#allocation2 + $0x28] sm:$0xff]
  %v408 = vld [vmem:[#allocation2 + $0x30] sm:$0xff]
  %v409 = vld [vmem:[#allocation2 + $0x38] sm:$0xff]
  %v410 = vld [vmem:[#allocation2 + $0x40] sm:$0xff]
  %v411 = vld [vmem:[#allocation2 + $0x48] sm:$0xff]
  %v412 = vld [vmem:[#allocation2 + $0x50] sm:$0xff]
  %v413 = vld [vmem:[#allocation2 + $0x58] sm:$0xff]
  %v414 = vld [vmem:[#allocation2 + $0x60] sm:$0xff]
  %v415 = vld [vmem:[#allocation2 + $0x68] sm:$0xff]
  %v416 = vld [vmem:[#allocation2 + $0x70] sm:$0xff]
  %v417 = vld [vmem:[#allocation2 + $0x78] sm:$0xff]
  %v418 = vld [vmem:[#allocation2 + $0x80] sm:$0xff]
  %v419 = vld [vmem:[#allocation2 + $0x88] sm:$0xff]
  %v420 = vld [vmem:[#allocation2 + $0x90] sm:$0xff]
  %v421 = vld [vmem:[#allocation2 + $0x98] sm:$0xff]
  %v422 = vld [vmem:[#allocation2 + $0xa0] sm:$0xff]
  %v423 = vld [vmem:[#allocation2 + $0xa8] sm:$0xff]
  %v424 = vld [vmem:[#allocation2 + $0xb0] sm:$0xff]
  %v425 = vld [vmem:[#allocation2 + $0xb8] sm:$0xff]
  %v426 = vld [vmem:[#allocation2 + $0xc0] sm:$0xff]
  %v427 = vld [vmem:[#allocation2 + $0xc8] sm:$0xff]
  %v428 = vld [vmem:[#allocation2 + $0xd0] sm:$0xff]
  %v429 = vld [vmem:[#allocation2 + $0xd8] sm:$0xff]
  %v430 = vld [vmem:[#allocation2 + $0xe0] sm:$0xff]
  %v431 = vld [vmem:[#allocation2 + $0xe8] sm:$0xff]
  %v432 = vld [vmem:[#allocation2 + $0xf0] sm:$0xff]
  %v433 = vld [vmem:[#allocation2 + $0xf8] sm:$0xff]
  %v434 = vld [vmem:[#allocation2 + $0x100] sm:$0xff]
  %v435 = vld [vmem:[#allocation2 + $0x108] sm:$0xff]
  %v436 = vld [vmem:[#allocation2 + $0x110] sm:$0xff]
  %v437 = vld [vmem:[#allocation2 + $0x118] sm:$0xff]
  %v438 = vpack.c.bf16 %v406, %v402
  %v439 = vpack.c.bf16 %v407, %v403
  %v440 = vpack.c.bf16 %v408, %v404
  %v441 = vpack.c.bf16 %v409, %v405
  %v442 = vpack.c.bf16 %v414, %v410
  %v443 = vpack.c.bf16 %v415, %v411
  %v444 = vpack.c.bf16 %v416, %v412
  %v445 = vpack.c.bf16 %v417, %v413
  %v446 = vpack.c.bf16 %v422, %v418
  %v447 = vpack.c.bf16 %v423, %v419
  %v448 = vpack.c.bf16 %v424, %v420
  %v449 = vpack.c.bf16 %v425, %v421
  %v450 = vpack.c.bf16 %v430, %v426
  %v451 = vpack.c.bf16 %v431, %v427
  %v452 = vpack.c.bf16 %v432, %v428
  %v453 = vpack.c.bf16 %v433, %v429
  %v454 = vpack.c.bf16 %v434, %v434
  %v455 = vpack.c.bf16 %v435, %v435
  %v456 = vpack.c.bf16 %v436, %v436
  %v457 = vpack.c.bf16 %v437, %v437
  %459 = vset.pattern.permute.xlu0 0
  %460 = vperm.xlu0 %459, %v43
  %v461 = vpop.permute.xlu0 %460
  %vm463 = vcmask 588800
  %v465 = vsel %vm463, %v42, 0
  %vm467 = vcmask 1043456
  %v469 = vsel %vm467, %v454, 0
  %v472 = vsel %vm467, %v455, 0
  %v475 = vsel %vm467, %v456, 0
  %v478 = vsel %vm467, %v457, 0
  %480 = vmatprep.subr.bf16.mxu0 %v439
  %481 = vmatpush1.bf16.msra.mxu0 %v438
  %482 = vmatprep.subr.bf16.mxu0 %v443
  %483 = vmatpush1.bf16.msra.mxu0 %v442
  %484 = vmatprep.subr.bf16.mxu0 %v447
  %485 = vmatpush1.bf16.msra.mxu0 %v446
  %486 = vmatprep.subr.bf16.mxu0 %v451
  %487 = vmatpush1.bf16.msra.mxu0 %v450
  %488 = vmatprep.subr.bf16.mxu0 %v472
  %489 = vmatpush1.bf16.msra.mxu0 %v469
  %490 = vmatprep.subr.bf16.mxu0 0
  %491 = vmatpush1.bf16.msra.mxu0 0
  %492 = vmatprep.subr.bf16.mxu0 0
  %493 = vmatpush1.bf16.msra.mxu0 0
  %494 = vmatprep.subr.bf16.mxu0 0
  %495 = vmatpush1.bf16.msra.mxu0 0
  %496 = vmatprep.subr.bf16.mxu0 0
  %497 = vmatpush1.bf16.msra.mxu0 0
  %498 = vmatprep.subr.bf16.mxu0 0
  %499 = vmatpush1.bf16.msra.mxu0 0
  %500 = vmatprep.subr.bf16.mxu0 0
  %501 = vmatpush1.bf16.msra.mxu0 0
  %502 = vmatprep.subr.bf16.mxu0 0
  %503 = vmatpush1.bf16.msra.mxu0 0
  %504 = vmatprep.subr.bf16.mxu0 0
  %505 = vmatpush1.bf16.msra.mxu0 0
  %506 = vmatprep.subr.bf16.mxu0 0
  %507 = vmatpush1.bf16.msra.mxu0 0
  %508 = vmatprep.subr.bf16.mxu0 0
  %509 = vmatpush1.bf16.msra.mxu0 0
  %510 = vmatprep.subr.bf16.mxu0 0
  %511 = vmatpush1.bf16.msra.mxu0 0
  %512 = vmatprep.mubr.bf16.mxu0 0
  %513 = vmatmul.mubr.bf16.gmra.mrb[0].mxu0 %v465
  %v514 = vpop.f32.mrb[0].mxu0
  %v515 = vadd.f32 %v461, %v514
  %v516 = vpop.f32.mrb[0].mxu0
  %v517 = vadd.f32 %v461, %v516
  %v518 = vpop.f32.mrb[0].mxu0
  %v519 = vpop.f32.mrb[0].mxu0
  %520 = vdwg.mxu0
  %521 = vmatprep.subr.bf16.mxu0 %v441
  %522 = vmatpush1.bf16.msra.mxu0 %v440
  %523 = vmatprep.subr.bf16.mxu0 %v445
  %524 = vmatpush1.bf16.msra.mxu0 %v444
  %525 = vmatprep.subr.bf16.mxu0 %v449
  %526 = vmatpush1.bf16.msra.mxu0 %v448
  %527 = vmatprep.subr.bf16.mxu0 %v453
  %528 = vmatpush1.bf16.msra.mxu0 %v452
  %529 = vmatprep.subr.bf16.mxu0 %v478
  %530 = vmatpush1.bf16.msra.mxu0 %v475
  %531 = vmatprep.subr.bf16.mxu0 0
  %532 = vmatpush1.bf16.msra.mxu0 0
  %533 = vmatprep.subr.bf16.mxu0 0
  %534 = vmatpush1.bf16.msra.mxu0 0
  %535 = vmatprep.subr.bf16.mxu0 0
  %536 = vmatpush1.bf16.msra.mxu0 0
  %537 = vmatprep.subr.bf16.mxu0 0
  %538 = vmatpush1.bf16.msra.mxu0 0
  %539 = vmatprep.subr.bf16.mxu0 0
  %540 = vmatpush1.bf16.msra.mxu0 0
  %541 = vmatprep.subr.bf16.mxu0 0
  %542 = vmatpush1.bf16.msra.mxu0 0
  %543 = vmatprep.subr.bf16.mxu0 0
  %544 = vmatpush1.bf16.msra.mxu0 0
  %545 = vmatprep.subr.bf16.mxu0 0
  %546 = vmatpush1.bf16.msra.mxu0 0
  %547 = vmatprep.subr.bf16.mxu0 0
  %548 = vmatpush1.bf16.msra.mxu0 0
  %549 = vmatprep.subr.bf16.mxu0 0
  %550 = vmatpush1.bf16.msra.mxu0 0
  %551 = vmatprep.subr.bf16.mxu0 0
  %552 = vmatpush1.bf16.msra.mxu0 0
  %553 = vmatprep.mubr.bf16.mxu0 0
  %554 = vmatmul.mubr.bf16.gmra.mrb[0].mxu0 %v465
  %v555 = vpop.f32.mrb[0].mxu0
  %v556 = vadd.f32 %v461, %v555
  %v557 = vpop.f32.mrb[0].mxu0
  %v558 = vadd.f32 %v461, %v557
  %v559 = vpop.f32.mrb[0].mxu0
  %v560 = vpop.f32.mrb[0].mxu0
  %561 = vdwg.mxu0
  %v562 = vmax.f32 %v515, 0.0
  %v563 = vmax.f32 %v517, 0.0
  %v564 = vmax.f32 %v556, 0.0
  %v565 = vmax.f32 %v558, 0.0
  %v566 = vld [vmem:[%s5] sm:$0xff]
  %v567 = vld [vmem:[%s6] sm:$0xff]
  %v568 = vmul.f32 %v562, %v562
  %v569 = vmul.f32 %v563, %v563
  %v570 = vmul.f32 %v564, %v564
  %v571 = vmul.f32 %v565, %v565
  %v572 = vadd.f32 %v562, %v563
  %v573 = vadd.f32 %v572, %v564
  %v574 = vadd.f32 %v573, %v565
  %575 = vadd.xlane.f32.xlu0 %v574
  %v576 = vpop.xlane.xlu0 %575
  %v577 = vadd.f32 %v568, %v569
  %v578 = vadd.f32 %v577, %v570
  %v579 = vadd.f32 %v578, %v571
  %580 = vadd.xlane.f32.xlu0 %v579
  %v581 = vpop.xlane.xlu0 %580
  %v582 = vmul.f32 %v576, 0.001953125
  %v583 = vmul.f32 %v581, 0.001953125
  %v584 = vmul.f32 %v582, %v582
  %v585 = vsub.f32 %v583, %v584
  %v586 = vadd.f32 %v585, 1e-05
  %v587 = vrsqrt.pop %v586
  %v588 = vmul.f32 %v566, %v587
  %v589 = vmul.f32 %v582, %v588
  %v590 = vsub.f32 %v567, %v589
  %592 = vset.pattern.permute.xlu0 0
  %593 = vperm.xlu0 %592, %v588
  %v594 = vpop.permute.xlu0 %593
  %v596 = vmul.f32 %v562, %v594
  %v597 = vmul.f32 %v563, %v594
  %v598 = vmul.f32 %v564, %v594
  %v599 = vmul.f32 %v565, %v594
  %601 = vset.pattern.permute.xlu0 0
  %602 = vperm.xlu0 %601, %v590
  %v603 = vpop.permute.xlu0 %602
  %v605 = vadd.f32 %v596, %v603
  %v606 = vadd.f32 %v597, %v603
  %v607 = vadd.f32 %v598, %v603
  %v608 = vadd.f32 %v599, %v603
  %v609 = vld [vmem:[%s7] sm:$0xf]
  %610 = vrot.lane.b32.xlu0 %v605, 17
  %v611 = vpop.permute.xlu0 %610
  %612 = vrot.lane.b32.xlu0 %v606, 17
  %v613 = vpop.permute.xlu0 %612
  %614 = vrot.lane.b32.xlu0 %v607, 17
  %v615 = vpop.permute.xlu0 %614
  %616 = vrot.lane.b32.xlu0 %v608, 17
  %v617 = vpop.permute.xlu0 %616
  %v618 = vsel %vm54, %v615, %v617
  %v619 = vsel %vm54, %v613, %v615
  %v620 = vsel %vm54, %v611, %v613
  %v621 = vsel %vm54, %v617, %v611
  %v622 = vmul.f32 %v621, %v67
  %v623 = vmul.f32 %v620, %v71
  %v624 = vmul.f32 %v619, %v75
  %v625 = vmul.f32 %v618, %v79
  %626 = vst [vmem:[#allocation2] sm:$0xff] %v622
  %627 = vst [vmem:[#allocation2 + $0x8] sm:$0xff] %v623
  %628 = vst [vmem:[#allocation2 + $0x10] sm:$0xff] %v624
  %629 = vst [vmem:[#allocation2 + $0x18] sm:$0xff] %v625
  %630 = vrot.lane.b32.xlu0 %v605, 16
  %v631 = vpop.permute.xlu0 %630
  %632 = vrot.lane.b32.xlu0 %v606, 16
  %v633 = vpop.permute.xlu0 %632
  %634 = vrot.lane.b32.xlu0 %v607, 16
  %v635 = vpop.permute.xlu0 %634
  %636 = vrot.lane.b32.xlu0 %v608, 16
  %v637 = vpop.permute.xlu0 %636
  %v638 = vsel %vm100, %v635, %v637
  %v639 = vsel %vm100, %v633, %v635
  %v640 = vsel %vm100, %v631, %v633
  %v641 = vsel %vm100, %v637, %v631
  %v642 = vmul.f32 %v641, %v110
  %v643 = vmul.f32 %v640, %v114
  %v644 = vmul.f32 %v639, %v118
  %v645 = vmul.f32 %v638, %v122
  %646 = vst [vmem:[#allocation2 + $0x20] sm:$0xff] %v642
  %647 = vst [vmem:[#allocation2 + $0x28] sm:$0xff] %v643
  %648 = vst [vmem:[#allocation2 + $0x30] sm:$0xff] %v644
  %649 = vst [vmem:[#allocation2 + $0x38] sm:$0xff] %v645
  %650 = vrot.lane.b32.xlu0 %v605, 15
  %v651 = vpop.permute.xlu0 %650
  %652 = vrot.lane.b32.xlu0 %v606, 15
  %v653 = vpop.permute.xlu0 %652
  %654 = vrot.lane.b32.xlu0 %v607, 15
  %v655 = vpop.permute.xlu0 %654
  %656 = vrot.lane.b32.xlu0 %v608, 15
  %v657 = vpop.permute.xlu0 %656
  %v658 = vsel %vm143, %v655, %v657
  %v659 = vsel %vm143, %v653, %v655
  %v660 = vsel %vm143, %v651, %v653
  %v661 = vsel %vm143, %v657, %v651
  %v662 = vmul.f32 %v661, %v155
  %v663 = vmul.f32 %v660, %v159
  %v664 = vmul.f32 %v659, %v163
  %v665 = vmul.f32 %v658, %v167
  %666 = vst [vmem:[#allocation2 + $0x40] sm:$0xff] %v662
  %667 = vst [vmem:[#allocation2 + $0x48] sm:$0xff] %v663
  %668 = vst [vmem:[#allocation2 + $0x50] sm:$0xff] %v664
  %669 = vst [vmem:[#allocation2 + $0x58] sm:$0xff] %v665
  %670 = vrot.lane.b32.xlu0 %v605, 1
  %v671 = vpop.permute.xlu0 %670
  %672 = vrot.lane.b32.xlu0 %v606, 1
  %v673 = vpop.permute.xlu0 %672
  %674 = vrot.lane.b32.xlu0 %v607, 1
  %v675 = vpop.permute.xlu0 %674
  %676 = vrot.lane.b32.xlu0 %v608, 1
  %v677 = vpop.permute.xlu0 %676
  %v678 = vsel %vm188, %v675, %v677
  %v679 = vsel %vm188, %v673, %v675
  %v680 = vsel %vm188, %v671, %v673
  %v681 = vsel %vm188, %v677, %v671
  %v682 = vmul.f32 %v681, %v198
  %v683 = vmul.f32 %v680, %v202
  %v684 = vmul.f32 %v679, %v206
  %v685 = vmul.f32 %v678, %v210
  %686 = vst [vmem:[#allocation2 + $0x60] sm:$0xff] %v682
  %687 = vst [vmem:[#allocation2 + $0x68] sm:$0xff] %v683
  %688 = vst [vmem:[#allocation2 + $0x70] sm:$0xff] %v684
  %689 = vst [vmem:[#allocation2 + $0x78] sm:$0xff] %v685
  %690 = vst [vmem:[#allocation2 + $0x80] sm:$0xff] %v605
  %691 = vst [vmem:[#allocation2 + $0x88] sm:$0xff] %v606
  %692 = vst [vmem:[#allocation2 + $0x90] sm:$0xff] %v607
  %693 = vst [vmem:[#allocation2 + $0x98] sm:$0xff] %v608
  %694 = vrot.lane.b32.xlu0 %v605, 127
  %v695 = vpop.permute.xlu0 %694
  %696 = vrot.lane.b32.xlu0 %v606, 127
  %v697 = vpop.permute.xlu0 %696
  %698 = vrot.lane.b32.xlu0 %v607, 127
  %v699 = vpop.permute.xlu0 %698
  %700 = vrot.lane.b32.xlu0 %v608, 127
  %v701 = vpop.permute.xlu0 %700
  %v702 = vsel %vm235, %v699, %v701
  %v703 = vsel %vm235, %v697, %v699
  %v704 = vsel %vm235, %v695, %v697
  %v705 = vsel %vm235, %v701, %v695
  %v706 = vmul.f32 %v704, %v245
  %v707 = vmul.f32 %v703, %v249
  %v708 = vmul.f32 %v702, %v253
  %v709 = vmul.f32 %v705, %v257
  %710 = vst [vmem:[#allocation2 + $0xa0] sm:$0xff] %v706
  %711 = vst [vmem:[#allocation2 + $0xa8] sm:$0xff] %v707
  %712 = vst [vmem:[#allocation2 + $0xb0] sm:$0xff] %v708
  %713 = vst [vmem:[#allocation2 + $0xb8] sm:$0xff] %v709
  %714 = vrot.lane.b32.xlu0 %v605, 113
  %v715 = vpop.permute.xlu0 %714
  %716 = vrot.lane.b32.xlu0 %v606, 113
  %v717 = vpop.permute.xlu0 %716
  %718 = vrot.lane.b32.xlu0 %v607, 113
  %v719 = vpop.permute.xlu0 %718
  %720 = vrot.lane.b32.xlu0 %v608, 113
  %v721 = vpop.permute.xlu0 %720
  %v722 = vsel %vm278, %v719, %v721
  %v723 = vsel %vm278, %v717, %v719
  %v724 = vsel %vm278, %v715, %v717
  %v725 = vsel %vm278, %v721, %v715
  %v726 = vmul.f32 %v724, %v290
  %v727 = vmul.f32 %v723, %v294
  %v728 = vmul.f32 %v722, %v298
  %v729 = vmul.f32 %v725, %v302
  %730 = vst [vmem:[#allocation2 + $0xc0] sm:$0xff] %v726
  %731 = vst [vmem:[#allocation2 + $0xc8] sm:$0xff] %v727
  %732 = vst [vmem:[#allocation2 + $0xd0] sm:$0xff] %v728
  %733 = vst [vmem:[#allocation2 + $0xd8] sm:$0xff] %v729
  %734 = vrot.lane.b32.xlu0 %v605, 112
  %v735 = vpop.permute.xlu0 %734
  %736 = vrot.lane.b32.xlu0 %v606, 112
  %v737 = vpop.permute.xlu0 %736
  %738 = vrot.lane.b32.xlu0 %v607, 112
  %v739 = vpop.permute.xlu0 %738
  %740 = vrot.lane.b32.xlu0 %v608, 112
  %v741 = vpop.permute.xlu0 %740
  %v742 = vsel %vm323, %v739, %v741
  %v743 = vsel %vm323, %v737, %v739
  %v744 = vsel %vm323, %v735, %v737
  %v745 = vsel %vm323, %v741, %v735
  %v746 = vmul.f32 %v744, %v333
  %v747 = vmul.f32 %v743, %v337
  %v748 = vmul.f32 %v742, %v341
  %v749 = vmul.f32 %v745, %v345
  %750 = vst [vmem:[#allocation2 + $0xe0] sm:$0xff] %v746
  %751 = vst [vmem:[#allocation2 + $0xe8] sm:$0xff] %v747
  %752 = vst [vmem:[#allocation2 + $0xf0] sm:$0xff] %v748
  %753 = vst [vmem:[#allocation2 + $0xf8] sm:$0xff] %v749
  %754 = vrot.lane.b32.xlu0 %v605, 111
  %v755 = vpop.permute.xlu0 %754
  %756 = vrot.lane.b32.xlu0 %v606, 111
  %v757 = vpop.permute.xlu0 %756
  %758 = vrot.lane.b32.xlu0 %v607, 111
  %v759 = vpop.permute.xlu0 %758
  %760 = vrot.lane.b32.xlu0 %v608, 111
  %v761 = vpop.permute.xlu0 %760
  %v762 = vsel %vm366, %v759, %v761
  %v763 = vsel %vm366, %v757, %v759
  %v764 = vsel %vm366, %v755, %v757
  %v765 = vsel %vm366, %v761, %v755
  %v766 = vmul.f32 %v764, %v377
  %v767 = vmul.f32 %v763, %v381
  %v768 = vmul.f32 %v762, %v385
  %v769 = vmul.f32 %v765, %v389
  %770 = vst [vmem:[#allocation2 + $0x100] sm:$0xff] %v766
  %771 = vst [vmem:[#allocation2 + $0x108] sm:$0xff] %v767
  %772 = vst [vmem:[#allocation2 + $0x110] sm:$0xff] %v768
  %773 = vst [vmem:[#allocation2 + $0x118] sm:$0xff] %v769
  %v774 = vld [vmem:[#allocation2] sm:$0xff]
  %v775 = vld [vmem:[#allocation2 + $0x8] sm:$0xff]
  %v776 = vld [vmem:[#allocation2 + $0x10] sm:$0xff]
  %v777 = vld [vmem:[#allocation2 + $0x18] sm:$0xff]
  %v778 = vld [vmem:[#allocation2 + $0x20] sm:$0xff]
  %v779 = vld [vmem:[#allocation2 + $0x28] sm:$0xff]
  %v780 = vld [vmem:[#allocation2 + $0x30] sm:$0xff]
  %v781 = vld [vmem:[#allocation2 + $0x38] sm:$0xff]
  %v782 = vld [vmem:[#allocation2 + $0x40] sm:$0xff]
  %v783 = vld [vmem:[#allocation2 + $0x48] sm:$0xff]
  %v784 = vld [vmem:[#allocation2 + $0x50] sm:$0xff]
  %v785 = vld [vmem:[#allocation2 + $0x58] sm:$0xff]
  %v786 = vld [vmem:[#allocation2 + $0x60] sm:$0xff]
  %v787 = vld [vmem:[#allocation2 + $0x68] sm:$0xff]
  %v788 = vld [vmem:[#allocation2 + $0x70] sm:$0xff]
  %v789 = vld [vmem:[#allocation2 + $0x78] sm:$0xff]
  %v790 = vld [vmem:[#allocation2 + $0x80] sm:$0xff]
  %v791 = vld [vmem:[#allocation2 + $0x88] sm:$0xff]
  %v792 = vld [vmem:[#allocation2 + $0x90] sm:$0xff]
  %v793 = vld [vmem:[#allocation2 + $0x98] sm:$0xff]
  %v794 = vld [vmem:[#allocation2 + $0xa0] sm:$0xff]
  %v795 = vld [vmem:[#allocation2 + $0xa8] sm:$0xff]
  %v796 = vld [vmem:[#allocation2 + $0xb0] sm:$0xff]
  %v797 = vld [vmem:[#allocation2 + $0xb8] sm:$0xff]
  %v798 = vld [vmem:[#allocation2 + $0xc0] sm:$0xff]
  %v799 = vld [vmem:[#allocation2 + $0xc8] sm:$0xff]
  %v800 = vld [vmem:[#allocation2 + $0xd0] sm:$0xff]
  %v801 = vld [vmem:[#allocation2 + $0xd8] sm:$0xff]
  %v802 = vld [vmem:[#allocation2 + $0xe0] sm:$0xff]
  %v803 = vld [vmem:[#allocation2 + $0xe8] sm:$0xff]
  %v804 = vld [vmem:[#allocation2 + $0xf0] sm:$0xff]
  %v805 = vld [vmem:[#allocation2 + $0xf8] sm:$0xff]
  %v806 = vld [vmem:[#allocation2 + $0x100] sm:$0xff]
  %v807 = vld [vmem:[#allocation2 + $0x108] sm:$0xff]
  %v808 = vld [vmem:[#allocation2 + $0x110] sm:$0xff]
  %v809 = vld [vmem:[#allocation2 + $0x118] sm:$0xff]
  %v810 = vpack.c.bf16 %v778, %v774
  %v811 = vpack.c.bf16 %v779, %v775
  %v812 = vpack.c.bf16 %v780, %v776
  %v813 = vpack.c.bf16 %v781, %v777
  %v814 = vpack.c.bf16 %v786, %v782
  %v815 = vpack.c.bf16 %v787, %v783
  %v816 = vpack.c.bf16 %v788, %v784
  %v817 = vpack.c.bf16 %v789, %v785
  %v818 = vpack.c.bf16 %v794, %v790
  %v819 = vpack.c.bf16 %v795, %v791
  %v820 = vpack.c.bf16 %v796, %v792
  %v821 = vpack.c.bf16 %v797, %v793
  %v822 = vpack.c.bf16 %v802, %v798
  %v823 = vpack.c.bf16 %v803, %v799
  %v824 = vpack.c.bf16 %v804, %v800
  %v825 = vpack.c.bf16 %v805, %v801
  %v826 = vpack.c.bf16 %v806, %v806
  %v827 = vpack.c.bf16 %v807, %v807
  %v828 = vpack.c.bf16 %v808, %v808
  %v829 = vpack.c.bf16 %v809, %v809
  %v831 = vsel %vm463, %v609, 0
  %v834 = vsel %vm467, %v826, 0
  %v837 = vsel %vm467, %v827, 0
  %v840 = vsel %vm467, %v828, 0
  %v843 = vsel %vm467, %v829, 0
  %845 = vmatprep.subr.bf16.mxu0 %v811
  %846 = vmatpush1.bf16.msra.mxu0 %v810
  %847 = vmatprep.subr.bf16.mxu0 %v815
  %848 = vmatpush1.bf16.msra.mxu0 %v814
  %849 = vmatprep.subr.bf16.mxu0 %v819
  %850 = vmatpush1.bf16.msra.mxu0 %v818
  %851 = vmatprep.subr.bf16.mxu0 %v823
  %852 = vmatpush1.bf16.msra.mxu0 %v822
  %853 = vmatprep.subr.bf16.mxu0 %v837
  %854 = vmatpush1.bf16.msra.mxu0 %v834
  %855 = vmatprep.subr.bf16.mxu0 0
  %856 = vmatpush1.bf16.msra.mxu0 0
  %857 = vmatprep.subr.bf16.mxu0 0
  %858 = vmatpush1.bf16.msra.mxu0 0
  %859 = vmatprep.subr.bf16.mxu0 0
  %860 = vmatpush1.bf16.msra.mxu0 0
  %861 = vmatprep.subr.bf16.mxu0 0
  %862 = vmatpush1.bf16.msra.mxu0 0
  %863 = vmatprep.subr.bf16.mxu0 0
  %864 = vmatpush1.bf16.msra.mxu0 0
  %865 = vmatprep.subr.bf16.mxu0 0
  %866 = vmatpush1.bf16.msra.mxu0 0
  %867 = vmatprep.subr.bf16.mxu0 0
  %868 = vmatpush1.bf16.msra.mxu0 0
  %869 = vmatprep.subr.bf16.mxu0 0
  %870 = vmatpush1.bf16.msra.mxu0 0
  %871 = vmatprep.subr.bf16.mxu0 0
  %872 = vmatpush1.bf16.msra.mxu0 0
  %873 = vmatprep.subr.bf16.mxu0 0
  %874 = vmatpush1.bf16.msra.mxu0 0
  %875 = vmatprep.subr.bf16.mxu0 0
  %876 = vmatpush1.bf16.msra.mxu0 0
  %877 = vmatprep.mubr.bf16.mxu0 0
  %878 = vmatmul.mubr.bf16.gmra.mrb[0].mxu0 %v831
  %v879 = vpop.f32.mrb[0].mxu0
  %v880 = vadd.f32 0.0, %v879
  %v881 = vpop.f32.mrb[0].mxu0
  %v882 = vadd.f32 0.0, %v881
  %v883 = vpop.f32.mrb[0].mxu0
  %v884 = vpop.f32.mrb[0].mxu0
  %885 = vdwg.mxu0
  %886 = vmatprep.subr.bf16.mxu0 %v813
  %887 = vmatpush1.bf16.msra.mxu0 %v812
  %888 = vmatprep.subr.bf16.mxu0 %v817
  %889 = vmatpush1.bf16.msra.mxu0 %v816
  %890 = vmatprep.subr.bf16.mxu0 %v821
  %891 = vmatpush1.bf16.msra.mxu0 %v820
  %892 = vmatprep.subr.bf16.mxu0 %v825
  %893 = vmatpush1.bf16.msra.mxu0 %v824
  %894 = vmatprep.subr.bf16.mxu0 %v843
  %895 = vmatpush1.bf16.msra.mxu0 %v840
  %896 = vmatprep.subr.bf16.mxu0 0
  %897 = vmatpush1.bf16.msra.mxu0 0
  %898 = vmatprep.subr.bf16.mxu0 0
  %899 = vmatpush1.bf16.msra.mxu0 0
  %900 = vmatprep.subr.bf16.mxu0 0
  %901 = vmatpush1.bf16.msra.mxu0 0
  %902 = vmatprep.subr.bf16.mxu0 0
  %903 = vmatpush1.bf16.msra.mxu0 0
  %904 = vmatprep.subr.bf16.mxu0 0
  %905 = vmatpush1.bf16.msra.mxu0 0
  %906 = vmatprep.subr.bf16.mxu0 0
  %907 = vmatpush1.bf16.msra.mxu0 0
  %908 = vmatprep.subr.bf16.mxu0 0
  %909 = vmatpush1.bf16.msra.mxu0 0
  %910 = vmatprep.subr.bf16.mxu0 0
  %911 = vmatpush1.bf16.msra.mxu0 0
  %912 = vmatprep.subr.bf16.mxu0 0
  %913 = vmatpush1.bf16.msra.mxu0 0
  %914 = vmatprep.subr.bf16.mxu0 0
  %915 = vmatpush1.bf16.msra.mxu0 0
  %916 = vmatprep.subr.bf16.mxu0 0
  %917 = vmatpush1.bf16.msra.mxu0 0
  %918 = vmatprep.mubr.bf16.mxu0 0
  %919 = vmatmul.mubr.bf16.gmra.mrb[0].mxu0 %v831
  %v920 = vpop.f32.mrb[0].mxu0
  %v921 = vadd.f32 0.0, %v920
  %v922 = vpop.f32.mrb[0].mxu0
  %v923 = vadd.f32 0.0, %v922
  %v924 = vpop.f32.mrb[0].mxu0
  %v925 = vpop.f32.mrb[0].mxu0
  %926 = vdwg.mxu0
  %v927 = vld [vmem:[%s8] sm:$0xff]
  %v928 = vld [vmem:[%s9] sm:$0xff]
  %v929 = vmul.f32 %v880, %v880
  %v930 = vmul.f32 %v882, %v882
  %v931 = vmul.f32 %v921, %v921
  %v932 = vmul.f32 %v923, %v923
  %v933 = vadd.f32 %v880, %v882
  %v934 = vadd.f32 %v933, %v921
  %v935 = vadd.f32 %v934, %v923
  %936 = vadd.xlane.f32.xlu0 %v935
  %v937 = vpop.xlane.xlu0 %936
  %v938 = vadd.f32 %v929, %v930
  %v939 = vadd.f32 %v938, %v931
  %v940 = vadd.f32 %v939, %v932
  %941 = vadd.xlane.f32.xlu0 %v940
  %v942 = vpop.xlane.xlu0 %941
  %v943 = vmul.f32 %v937, 0.001953125
  %v944 = vmul.f32 %v942, 0.001953125
  %v945 = vmul.f32 %v943, %v943
  %v946 = vsub.f32 %v944, %v945
  %v947 = vadd.f32 %v946, 1e-05
  %v948 = vrsqrt.pop %v947
  %v949 = vmul.f32 %v927, %v948
  %v950 = vmul.f32 %v943, %v949
  %v951 = vsub.f32 %v928, %v950
  %953 = vset.pattern.permute.xlu0 0
  %954 = vperm.xlu0 %953, %v949
  %v955 = vpop.permute.xlu0 %954
  %v957 = vmul.f32 %v880, %v955
  %v958 = vmul.f32 %v882, %v955
  %v959 = vmul.f32 %v921, %v955
  %v960 = vmul.f32 %v923, %v955
  %962 = vset.pattern.permute.xlu0 0
  %963 = vperm.xlu0 %962, %v951
  %v964 = vpop.permute.xlu0 %963
  %v966 = vadd.f32 %v957, %v964
  %v967 = vadd.f32 %v958, %v964
  %v968 = vadd.f32 %v959, %v964
  %v969 = vadd.f32 %v960, %v964
  %v970 = vadd.f32 %v966, %v36
  %v971 = vadd.f32 %v967, %v37
  %v972 = vadd.f32 %v968, %v38
  %v973 = vadd.f32 %v969, %v39
  %v974 = vmax.f32 %v970, 0.0
  %v975 = vmax.f32 %v971, 0.0
  %v976 = vmax.f32 %v972, 0.0
  %v977 = vmax.f32 %v973, 0.0
  %978 = vst [vmem:[%s10] sm:$0xff] %v974
  %979 = vst [vmem:[%s10 + $0x8] sm:$0xff] %v975
  %980 = vst [vmem:[%s10 + $0x10] sm:$0xff] %v976
  %981 = vst [vmem:[%s10 + $0x18] sm:$0xff] %v977
  // Predicated region
  $region42: #{residual_block.1} parent=0 // pred_check
    _
  $region43: #{residual_block.1} parent=0 // pred_check_branch
    %983 = sbr.rel (0) target = $region45
  $region44: #{residual_block.1} parent=0 // pred_region
    _
  $region45: #{residual_block.1} parent=0 // pred_fallthru
    _
  // Predicated region
  $region46: #{residual_block.1} parent=0 // pred_check
    _
  $region47: #{residual_block.1} parent=0 // pred_check_branch
    %985 = sbr.rel (0) target = $region49
  $region48: #{residual_block.1} parent=0 // pred_region
    _
  $region49: #{residual_block.1} parent=0 // pred_fallthru
    _

</llo_original>
